<compile_context>
chip_gen: v5e
topology: v5e:2x2
jax: 0.10.0
libtpu: 0.0.40
codegen_flags: <defaults>
</compile_context>

<pallas_src>
import jax
import jax.numpy as jnp
from jax.experimental import pallas as pl
from jax.experimental.pallas import tpu as pltpu

EPS = 1e-5


# ---------------------------------------------------------------------------
# Host-side constant / weight preparation
# ---------------------------------------------------------------------------
def _bilinear_matrix(n_in: int, n_out: int) -> jnp.ndarray:
    """Interpolation matrix M (n_out, n_in): bilinear, align_corners=True."""
    idx = jnp.arange(n_out, dtype=jnp.float32)
    src = idx * (n_in - 1) / (n_out - 1)
    lo = jnp.clip(jnp.floor(src).astype(jnp.int32), 0, n_in - 2)
    frac = src - lo.astype(jnp.float32)
    m = jnp.zeros((n_out, n_in), jnp.float32)
    rows = jnp.arange(n_out)
    m = m.at[rows, lo].add(1.0 - frac)
    m = m.at[rows, lo + 1].add(frac)
    return m


def _stacked_conv_weights(w_hwio: jnp.ndarray, wo: int) -> jnp.ndarray:
    """3x3 'same' conv as ONE matmul: dy taps stacked along K, dx taps + W zero-pad banded.

    Returns (3*Ci*Wo, Co*Wo) bf16 with
      W[dy*Ci*Wo + ci*Wo + k, co*Wo + w] = w_hwio[dy, k-w+1, ci, co]  for |k-w| <= 1, else 0.
    A stacked LHS row [act[h-1] | act[h] | act[h+1]] (C-major folded, Ci*Wo lanes per block)
    then yields every W position and output channel of output row h in a single MXU pass.
    """
    ci, co = w_hwio.shape[2], w_hwio.shape[3]
    e = jnp.arange(3)[:, None, None]          # dx tap
    wpos = jnp.arange(wo)[None, :, None]      # output w
    k = jnp.arange(wo)[None, None, :]         # input w
    sel = (k == wpos + e - 1).astype(jnp.float32)                      # (3, Wo, Wo)
    band = jnp.einsum("ewk,deio->dikow", sel, w_hwio.astype(jnp.float32))
    return band.reshape(3 * ci * wo, co * wo).astype(jnp.bfloat16)


# ---------------------------------------------------------------------------
# Fused kernel: upsample + concat + conv1..conv4, one grid step per super-batch
# ---------------------------------------------------------------------------
def _make_fused_kernel(nb: int, ho: int):
    R = nb * ho  # matmul M: all NB batches stacked as rows

    def kernel(x_ref, skip_ref, mh_ref, mwk_ref,
               w1_ref, s1_ref, b1_ref, w2_ref, s2_ref, b2_ref,
               w3_ref, s3_ref, b3_ref, w4_ref, s4_ref, b4_ref, out_ref):
        f32, bf16 = jnp.float32, jnp.bfloat16

        # Row masks injecting the conv's H zero-padding at per-batch boundary rows
        # (batches are stacked along M, so a plain row shift would leak across batches).
        pos = jax.lax.broadcasted_iota(jnp.int32, (R, 1), 0)
        cond_top = pos != 0
        cond_bot = pos != ho - 1
        for b in range(1, nb):
            cond_top = jnp.logical_and(cond_top, pos != b * ho)
            cond_bot = jnp.logical_and(cond_bot, pos != b * ho + ho - 1)
        mask_top = cond_top.astype(f32)
        mask_bot = cond_bot.astype(f32)

        # ---- bilinear 2x upsample (align_corners=True): 2 bf16 MXU matmuls, all batches ----
        xf = x_ref[...].astype(bf16)                                          # (NB*H, Cx*W)
        u = jnp.dot(mh_ref[...], xf, preferred_element_type=f32)              # (NB*Ho, Cx*W)
        up = jnp.dot(u.astype(bf16), mwk_ref[...], preferred_element_type=f32)  # (NB*Ho, Cx*Wo)

        # ---- channel concat [skip_x, upsample(x)] in the C-major folded layout ----
        xc = jnp.concatenate([skip_ref[...].astype(f32), up], axis=1)         # (NB*Ho, Cin*Wo)

        def conv_bn(a, w_ref, s_ref, b_ref):
            # 3x3 conv (pad=1, no bias) + folded BN affine as ONE matmul with K = 3*Ci*Wo.
            # dy taps = row-shifted copies stacked along lanes, dx taps + W zero-pad are in
            # the banded weights, H zero-pad via the boundary masks. bf16 MXU, f32 acc.
            z = jnp.zeros((1, a.shape[1]), f32)
            up_t = jnp.concatenate([z, a[:-1, :]], axis=0) * mask_top         # act row h-1
            dn_t = jnp.concatenate([a[1:, :], z], axis=0) * mask_bot          # act row h+1
            lhs = jnp.concatenate([up_t, a, dn_t], axis=1).astype(bf16)       # (R, 3*Ci*Wo)
            y = jnp.dot(lhs, w_ref[...], preferred_element_type=f32)
            return y * s_ref[...] + b_ref[...]

        # tanh GELU -> EUP slot (small deviation vs PyTorch's exact-erf GELU).
        gelu = lambda v: jax.nn.gelu(v, approximate=True)

        # ConvBlock(Cin, Cin, residual=True): gelu(xc + bn2(conv2(gelu(bn1(conv1(xc))))))
        h1 = gelu(conv_bn(xc, w1_ref, s1_ref, b1_ref))
        h2 = gelu(xc + conv_bn(h1, w2_ref, s2_ref, b2_ref))
        # ConvBlock(Cin, Cout, mid=Cin//2); trailing BatchNorm2d folded into (s4, b4)
        h3 = gelu(conv_bn(h2, w3_ref, s3_ref, b3_ref))
        out_ref[...] = conv_bn(h3, w4_ref, s4_ref, b4_ref).astype(out_ref.dtype)

    return kernel


# ---------------------------------------------------------------------------
# Public forward (NCHW in / NCHW out, matching the PyTorch module)
# ---------------------------------------------------------------------------
@jax.jit
def upsample_forward(x_nchw, skip_nchw, params):
    n, cx, h, w = x_nchw.shape
    _, cs, ho, wo = skip_nchw.shape
    cin = cx + cs
    cmid = cin // 2
    cout = params["s4"].shape[0]

    # Pad mid channels so the conv3 output / conv4 input is a full multiple of 128 lanes
    # (unmasked stores/loads); padded channels carry exact zeros and zero weights.
    if 128 % wo == 0 and (wo * cmid) % 128 != 0:
        cmid_p = ((wo * cmid + 127) // 128) * (128 // wo)
    else:
        cmid_p = cmid

    # Super-batch size: NB batches folded into the matmul M dimension per grid step.
    nb = 1
    for cand in (8, 4, 2, 1):
        if n % cand == 0:
            nb = cand
            break
    nb = min(nb, n)

    # NCHW -> C-major folded rows: row = b*H + h, col = c*W + w (lane-dense last dim).
    x2d = jnp.transpose(x_nchw, (0, 2, 1, 3)).reshape(n * h, cx * w)
    sk2d = jnp.transpose(skip_nchw, (0, 2, 1, 3)).reshape(n * ho, cs * wo)

    # Shape-only constant matrices (tiny, bf16 for single-pass MXU).
    mh = _bilinear_matrix(h, ho)                                            # (Ho, H)
    mw = _bilinear_matrix(w, wo)                                            # (Wo, W)
    mh_bd = jnp.kron(jnp.eye(nb, dtype=jnp.float32), mh).astype(jnp.bfloat16)   # (nb*Ho, nb*H)
    mwk = jnp.einsum("cd,ow->cwdo", jnp.eye(cx, dtype=jnp.float32), mw)
    mwk = mwk.reshape(cx * w, cx * wo).astype(jnp.bfloat16)                 # (Cx*W, Cx*Wo)

    # Conv weights -> K-stacked banded bf16 matrices; BN affines -> lane-replicated f32 rows.
    zpad = lambda a, axis, num: jnp.pad(
        a, [(0, num) if i == axis else (0, 0) for i in range(a.ndim)])
    w3p = zpad(params["w3"], 3, cmid_p - cmid)     # pad output channels of conv3
    w4p = zpad(params["w4"], 2, cmid_p - cmid)     # pad input channels of conv4
    w1 = _stacked_conv_weights(params["w1"], wo)
    w2 = _stacked_conv_weights(params["w2"], wo)
    w3 = _stacked_conv_weights(w3p, wo)
    w4 = _stacked_conv_weights(w4p, wo)

    row = lambda v: jnp.repeat(v.astype(jnp.float32), wo).reshape(1, -1)    # col = c*Wo + w
    s1, b1 = row(params["s1"]), row(params["b1"])
    s2, b2 = row(params["s2"]), row(params["b2"])
    s3 = row(zpad(params["s3"], 0, cmid_p - cmid))
    b3 = row(zpad(params["b3"], 0, cmid_p - cmid))
    s4, b4 = row(params["s4"]), row(params["b4"])

    kernel = _make_fused_kernel(nb, ho)
    full = lambda shape: pl.BlockSpec(shape, lambda g: (0, 0))

    out2d = pl.pallas_call(
        kernel,
        out_shape=jax.ShapeDtypeStruct((n * ho, cout * wo), x_nchw.dtype),
        grid=(n // nb,),
        in_specs=[
            pl.BlockSpec((nb * h, cx * w), lambda g: (g, 0)),     # x rows (super-batch)
            pl.BlockSpec((nb * ho, cs * wo), lambda g: (g, 0)),   # skip rows (super-batch)
            full(mh_bd.shape), full(mwk.shape),
            full(w1.shape), full(s1.shape), full(b1.shape),
            full(w2.shape), full(s2.shape), full(b2.shape),
            full(w3.shape), full(s3.shape), full(b3.shape),
            full(w4.shape), full(s4.shape), full(b4.shape),
        ],
        out_specs=pl.BlockSpec((nb * ho, cout * wo), lambda g: (g, 0)),
        compiler_params=pltpu.CompilerParams(
            dimension_semantics=("parallel",)),
    )(x2d, sk2d, mh_bd, mwk, w1, s1, b1, w2, s2, b2, w3, s3, b3, w4, s4, b4)

    # folded rows (N*Ho, Cout*Wo) -> NCHW
    return jnp.transpose(out2d.reshape(n, ho, cout, wo), (0, 2, 1, 3))


# ---------------------------------------------------------------------------
# Deterministic synthetic parameters (eval-mode BN folded into scale/bias)
# ---------------------------------------------------------------------------
def _bn_affine(key, c):
    kg, kb, km, kv = jax.random.split(key, 4)
    gamma = 1.0 + 0.1 * jax.random.normal(kg, (c,), jnp.float32)
    beta = 0.1 * jax.random.normal(kb, (c,), jnp.float32)
    mean = 0.1 * jax.random.normal(km, (c,), jnp.float32)
    var = 1.0 + 0.1 * jnp.abs(jax.random.normal(kv, (c,), jnp.float32))
    scale = gamma / jnp.sqrt(var + EPS)
    bias = beta - mean * scale
    return scale, bias


def init_params(key, c_in, c_out):
    mid = c_in // 2
    ks = jax.random.split(key, 9)
    conv = lambda k, ci, co: 0.1 * jax.random.normal(k, (3, 3, ci, co), jnp.float32)
    p = {}
    # ConvBlock1 (c_in -> c_in, residual)
    p["w1"] = conv(ks[0], c_in, c_in)
    p["s1"], p["b1"] = _bn_affine(ks[1], c_in)
    p["w2"] = conv(ks[2], c_in, c_in)
    p["s2"], p["b2"] = _bn_affine(ks[3], c_in)
    # ConvBlock2 (c_in -> mid -> c_out)
    p["w3"] = conv(ks[4], c_in, mid)
    p["s3"], p["b3"] = _bn_affine(ks[5], mid)
    p["w4"] = conv(ks[6], mid, c_out)
    s4, b4 = _bn_affine(ks[7], c_out)
    # Final BatchNorm2d(c_out): fold into conv4's affine.
    s5, b5 = _bn_affine(ks[8], c_out)
    p["s4"] = s5 * s4
    p["b4"] = s5 * b4 + b5
    return p


if __name__ == "__main__":
    key = jax.random.PRNGKey(0)
    kx, ks, kp = jax.random.split(key, 3)

    # x: (N, C_x, H, W); skip_x: (N, C_skip, 2H, 2W); in_channels = C_x + C_skip
    N, C_x, H, W = 2, 4, 8, 8
    C_skip = 4
    c_in = C_x + C_skip          # 8
    c_out = 8
    x = jax.random.normal(kx, (N, C_x, H, W), jnp.float32)
    skip_x = jax.random.normal(ks, (N, C_skip, 2 * H, 2 * W), jnp.float32)

    params = init_params(kp, c_in, c_out)

    out = upsample_forward(x, skip_x, params)
    jax.block_until_ready(out)
    assert out.shape == (N, c_out, 2 * H, 2 * W), out.shape
    assert bool(jnp.all(jnp.isfinite(out)))
    print("KERNEL_OK")
</pallas_src>

<mosaic_0001>
module attributes {stable_mosaic.version = 11 : i64} {
  func.func @kernel(%arg0: i32, %arg1: memref<16x32xf32, #tpu.memory_space<vmem>>, %arg2: memref<32x64xf32, #tpu.memory_space<vmem>>, %arg3: memref<32x16xbf16, #tpu.memory_space<vmem>>, %arg4: memref<32x64xbf16, #tpu.memory_space<vmem>>, %arg5: memref<384x128xbf16, #tpu.memory_space<vmem>>, %arg6: memref<1x128xf32, #tpu.memory_space<vmem>>, %arg7: memref<1x128xf32, #tpu.memory_space<vmem>>, %arg8: memref<384x128xbf16, #tpu.memory_space<vmem>>, %arg9: memref<1x128xf32, #tpu.memory_space<vmem>>, %arg10: memref<1x128xf32, #tpu.memory_space<vmem>>, %arg11: memref<384x128xbf16, #tpu.memory_space<vmem>>, %arg12: memref<1x128xf32, #tpu.memory_space<vmem>>, %arg13: memref<1x128xf32, #tpu.memory_space<vmem>>, %arg14: memref<384x128xbf16, #tpu.memory_space<vmem>>, %arg15: memref<1x128xf32, #tpu.memory_space<vmem>>, %arg16: memref<1x128xf32, #tpu.memory_space<vmem>>, %arg17: memref<32x128xf32, #tpu.memory_space<vmem>>) attributes {dimension_semantics = [#tpu.dimension_semantics<parallel>], iteration_bounds = array<i64: 1>, scalar_prefetch = 0 : i64, scratch_operands = 0 : i64, tpu.core_type = #tpu.core_type<tc>, window_params = [{transform_indices = @transform_0, window_bounds = array<i64: 16, 32>}, {transform_indices = @transform_1, window_bounds = array<i64: 32, 64>}, {pipeline_mode = #tpu.pipeline_mode<synchronous>, transform_indices = @transform_2, window_bounds = array<i64: 32, 16>}, {pipeline_mode = #tpu.pipeline_mode<synchronous>, transform_indices = @transform_3, window_bounds = array<i64: 32, 64>}, {pipeline_mode = #tpu.pipeline_mode<synchronous>, transform_indices = @transform_4, window_bounds = array<i64: 384, 128>}, {pipeline_mode = #tpu.pipeline_mode<synchronous>, transform_indices = @transform_5, window_bounds = array<i64: 1, 128>}, {pipeline_mode = #tpu.pipeline_mode<synchronous>, transform_indices = @transform_6, window_bounds = array<i64: 1, 128>}, {pipeline_mode = #tpu.pipeline_mode<synchronous>, transform_indices = @transform_7, window_bounds = array<i64: 384, 128>}, {pipeline_mode = #tpu.pipeline_mode<synchronous>, transform_indices = @transform_8, window_bounds = array<i64: 1, 128>}, {pipeline_mode = #tpu.pipeline_mode<synchronous>, transform_indices = @transform_9, window_bounds = array<i64: 1, 128>}, {pipeline_mode = #tpu.pipeline_mode<synchronous>, transform_indices = @transform_10, window_bounds = array<i64: 384, 128>}, {pipeline_mode = #tpu.pipeline_mode<synchronous>, transform_indices = @transform_11, window_bounds = array<i64: 1, 128>}, {pipeline_mode = #tpu.pipeline_mode<synchronous>, transform_indices = @transform_12, window_bounds = array<i64: 1, 128>}, {pipeline_mode = #tpu.pipeline_mode<synchronous>, transform_indices = @transform_13, window_bounds = array<i64: 384, 128>}, {pipeline_mode = #tpu.pipeline_mode<synchronous>, transform_indices = @transform_14, window_bounds = array<i64: 1, 128>}, {pipeline_mode = #tpu.pipeline_mode<synchronous>, transform_indices = @transform_15, window_bounds = array<i64: 1, 128>}, {transform_indices = @transform_16, window_bounds = array<i64: 32, 128>}]} {
    %0 = tpu.iota {dimensions = array<i32: 0>} : vector<32x1xi32>
    %c0_i32 = arith.constant 0 : i32
    %1 = vector.broadcast %c0_i32 : i32 to vector<32x1xi32>
    %2 = arith.cmpi ne, %0, %1 : vector<32x1xi32>
    %c15_i32 = arith.constant 15 : i32
    %3 = vector.broadcast %c15_i32 : i32 to vector<32x1xi32>
    %4 = arith.cmpi ne, %0, %3 : vector<32x1xi32>
    %c16_i32 = arith.constant 16 : i32
    %5 = vector.broadcast %c16_i32 : i32 to vector<32x1xi32>
    %6 = arith.cmpi ne, %0, %5 : vector<32x1xi32>
    %7 = arith.andi %2, %6 : vector<32x1xi1>
    %c31_i32 = arith.constant 31 : i32
    %8 = vector.broadcast %c31_i32 : i32 to vector<32x1xi32>
    %9 = arith.cmpi ne, %0, %8 : vector<32x1xi32>
    %10 = arith.andi %4, %9 : vector<32x1xi1>
    %11 = arith.extui %7 : vector<32x1xi1> to vector<32x1xi32>
    %12 = arith.sitofp %11 : vector<32x1xi32> to vector<32x1xf32>
    %13 = arith.extui %10 : vector<32x1xi1> to vector<32x1xi32>
    %14 = arith.sitofp %13 : vector<32x1xi32> to vector<32x1xf32>
    %c0 = arith.constant 0 : index
    %c0_0 = arith.constant 0 : index
    %15 = vector.load %arg1[%c0, %c0_0] : memref<16x32xf32, #tpu.memory_space<vmem>>, vector<16x32xf32>
    %16 = arith.truncf %15 : vector<16x32xf32> to vector<16x32xbf16>
    %c0_1 = arith.constant 0 : index
    %c0_2 = arith.constant 0 : index
    %17 = vector.load %arg3[%c0_1, %c0_2] : memref<32x16xbf16, #tpu.memory_space<vmem>>, vector<32x16xbf16>
    %cst = arith.constant dense<0.000000e+00> : vector<32x32xf32>
    %18 = tpu.matmul %17, %16, %cst {dimension_numbers = #tpu.dot_dimension_numbers<[1], [0], [0], [1], [0, 0, 1, 1], [], []>} : vector<32x16xbf16>, vector<16x32xbf16>, vector<32x32xf32> -> vector<32x32xf32>
    %19 = arith.truncf %18 : vector<32x32xf32> to vector<32x32xbf16>
    %c0_3 = arith.constant 0 : index
    %c0_4 = arith.constant 0 : index
    %20 = vector.load %arg4[%c0_3, %c0_4] : memref<32x64xbf16, #tpu.memory_space<vmem>>, vector<32x64xbf16>
    %cst_5 = arith.constant dense<0.000000e+00> : vector<32x64xf32>
    %21 = tpu.matmul %19, %20, %cst_5 {dimension_numbers = #tpu.dot_dimension_numbers<[1], [0], [0], [1], [0, 0, 1, 1], [], []>} : vector<32x32xbf16>, vector<32x64xbf16>, vector<32x64xf32> -> vector<32x64xf32>
    %c0_6 = arith.constant 0 : index
    %c0_7 = arith.constant 0 : index
    %22 = vector.load %arg2[%c0_6, %c0_7] : memref<32x64xf32, #tpu.memory_space<vmem>>, vector<32x64xf32>
    %23 = tpu.concatenate %22, %21 in 1 : vector<32x64xf32>, vector<32x64xf32> -> vector<32x128xf32>
    %cst_8 = arith.constant 0.000000e+00 : f32
    %24 = vector.broadcast %cst_8 : f32 to vector<1x128xf32>
    %25 = vector.extract_strided_slice %23 {offsets = [0, 0], sizes = [31, 128], strides = [1, 1]} : vector<32x128xf32> to vector<31x128xf32>
    %26 = tpu.concatenate %24, %25 in 0 : vector<1x128xf32>, vector<31x128xf32> -> vector<32x128xf32>
    %27 = vector.broadcast %12 : vector<32x1xf32> to vector<32x128xf32>
    %28 = arith.mulf %26, %27 : vector<32x128xf32>
    %29 = vector.extract_strided_slice %23 {offsets = [1, 0], sizes = [31, 128], strides = [1, 1]} : vector<32x128xf32> to vector<31x128xf32>
    %30 = tpu.concatenate %29, %24 in 0 : vector<31x128xf32>, vector<1x128xf32> -> vector<32x128xf32>
    %31 = vector.broadcast %14 : vector<32x1xf32> to vector<32x128xf32>
    %32 = arith.mulf %30, %31 : vector<32x128xf32>
    %33 = tpu.concatenate %28, %23, %32 in 1 : vector<32x128xf32>, vector<32x128xf32>, vector<32x128xf32> -> vector<32x384xf32>
    %34 = arith.truncf %33 : vector<32x384xf32> to vector<32x384xbf16>
    %c0_9 = arith.constant 0 : index
    %c0_10 = arith.constant 0 : index
    %35 = vector.load %arg5[%c0_9, %c0_10] : memref<384x128xbf16, #tpu.memory_space<vmem>>, vector<384x128xbf16>
    %cst_11 = arith.constant dense<0.000000e+00> : vector<32x128xf32>
    %36 = tpu.matmul %34, %35, %cst_11 {dimension_numbers = #tpu.dot_dimension_numbers<[1], [0], [0], [1], [0, 0, 1, 1], [], []>} : vector<32x384xbf16>, vector<384x128xbf16>, vector<32x128xf32> -> vector<32x128xf32>
    %c0_12 = arith.constant 0 : index
    %c0_13 = arith.constant 0 : index
    %37 = vector.load %arg6[%c0_12, %c0_13] : memref<1x128xf32, #tpu.memory_space<vmem>>, vector<1x128xf32>
    %38 = vector.broadcast %37 : vector<1x128xf32> to vector<32x128xf32>
    %39 = arith.mulf %36, %38 : vector<32x128xf32>
    %c0_14 = arith.constant 0 : index
    %c0_15 = arith.constant 0 : index
    %40 = vector.load %arg7[%c0_14, %c0_15] : memref<1x128xf32, #tpu.memory_space<vmem>>, vector<1x128xf32>
    %41 = vector.broadcast %40 : vector<1x128xf32> to vector<32x128xf32>
    %42 = arith.addf %39, %41 : vector<32x128xf32>
    %43 = arith.mulf %42, %42 : vector<32x128xf32>
    %44 = arith.mulf %42, %43 : vector<32x128xf32>
    %cst_16 = arith.constant 4.471500e-02 : f32
    %45 = vector.broadcast %cst_16 : f32 to vector<32x128xf32>
    %46 = arith.mulf %45, %44 : vector<32x128xf32>
    %47 = arith.addf %42, %46 : vector<32x128xf32>
    %cst_17 = arith.constant 0.797884583 : f32
    %48 = vector.broadcast %cst_17 : f32 to vector<32x128xf32>
    %49 = arith.mulf %48, %47 : vector<32x128xf32>
    %50 = math.tanh %49 : vector<32x128xf32>
    %cst_18 = arith.constant 1.000000e+00 : f32
    %51 = vector.broadcast %cst_18 : f32 to vector<32x128xf32>
    %52 = arith.addf %51, %50 : vector<32x128xf32>
    %cst_19 = arith.constant 5.000000e-01 : f32
    %53 = vector.broadcast %cst_19 : f32 to vector<32x128xf32>
    %54 = arith.mulf %53, %52 : vector<32x128xf32>
    %55 = arith.mulf %42, %54 : vector<32x128xf32>
    %cst_20 = arith.constant 0.000000e+00 : f32
    %56 = vector.broadcast %cst_20 : f32 to vector<1x128xf32>
    %57 = vector.extract_strided_slice %55 {offsets = [0, 0], sizes = [31, 128], strides = [1, 1]} : vector<32x128xf32> to vector<31x128xf32>
    %58 = tpu.concatenate %56, %57 in 0 : vector<1x128xf32>, vector<31x128xf32> -> vector<32x128xf32>
    %59 = vector.broadcast %12 : vector<32x1xf32> to vector<32x128xf32>
    %60 = arith.mulf %58, %59 : vector<32x128xf32>
    %61 = vector.extract_strided_slice %55 {offsets = [1, 0], sizes = [31, 128], strides = [1, 1]} : vector<32x128xf32> to vector<31x128xf32>
    %62 = tpu.concatenate %61, %56 in 0 : vector<31x128xf32>, vector<1x128xf32> -> vector<32x128xf32>
    %63 = vector.broadcast %14 : vector<32x1xf32> to vector<32x128xf32>
    %64 = arith.mulf %62, %63 : vector<32x128xf32>
    %65 = tpu.concatenate %60, %55, %64 in 1 : vector<32x128xf32>, vector<32x128xf32>, vector<32x128xf32> -> vector<32x384xf32>
    %66 = arith.truncf %65 : vector<32x384xf32> to vector<32x384xbf16>
    %c0_21 = arith.constant 0 : index
    %c0_22 = arith.constant 0 : index
    %67 = vector.load %arg8[%c0_21, %c0_22] : memref<384x128xbf16, #tpu.memory_space<vmem>>, vector<384x128xbf16>
    %cst_23 = arith.constant dense<0.000000e+00> : vector<32x128xf32>
    %68 = tpu.matmul %66, %67, %cst_23 {dimension_numbers = #tpu.dot_dimension_numbers<[1], [0], [0], [1], [0, 0, 1, 1], [], []>} : vector<32x384xbf16>, vector<384x128xbf16>, vector<32x128xf32> -> vector<32x128xf32>
    %c0_24 = arith.constant 0 : index
    %c0_25 = arith.constant 0 : index
    %69 = vector.load %arg9[%c0_24, %c0_25] : memref<1x128xf32, #tpu.memory_space<vmem>>, vector<1x128xf32>
    %70 = vector.broadcast %69 : vector<1x128xf32> to vector<32x128xf32>
    %71 = arith.mulf %68, %70 : vector<32x128xf32>
    %c0_26 = arith.constant 0 : index
    %c0_27 = arith.constant 0 : index
    %72 = vector.load %arg10[%c0_26, %c0_27] : memref<1x128xf32, #tpu.memory_space<vmem>>, vector<1x128xf32>
    %73 = vector.broadcast %72 : vector<1x128xf32> to vector<32x128xf32>
    %74 = arith.addf %71, %73 : vector<32x128xf32>
    %75 = arith.addf %23, %74 : vector<32x128xf32>
    %76 = arith.mulf %75, %75 : vector<32x128xf32>
    %77 = arith.mulf %75, %76 : vector<32x128xf32>
    %cst_28 = arith.constant 4.471500e-02 : f32
    %78 = vector.broadcast %cst_28 : f32 to vector<32x128xf32>
    %79 = arith.mulf %78, %77 : vector<32x128xf32>
    %80 = arith.addf %75, %79 : vector<32x128xf32>
    %cst_29 = arith.constant 0.797884583 : f32
    %81 = vector.broadcast %cst_29 : f32 to vector<32x128xf32>
    %82 = arith.mulf %81, %80 : vector<32x128xf32>
    %83 = math.tanh %82 : vector<32x128xf32>
    %cst_30 = arith.constant 1.000000e+00 : f32
    %84 = vector.broadcast %cst_30 : f32 to vector<32x128xf32>
    %85 = arith.addf %84, %83 : vector<32x128xf32>
    %cst_31 = arith.constant 5.000000e-01 : f32
    %86 = vector.broadcast %cst_31 : f32 to vector<32x128xf32>
    %87 = arith.mulf %86, %85 : vector<32x128xf32>
    %88 = arith.mulf %75, %87 : vector<32x128xf32>
    %cst_32 = arith.constant 0.000000e+00 : f32
    %89 = vector.broadcast %cst_32 : f32 to vector<1x128xf32>
    %90 = vector.extract_strided_slice %88 {offsets = [0, 0], sizes = [31, 128], strides = [1, 1]} : vector<32x128xf32> to vector<31x128xf32>
    %91 = tpu.concatenate %89, %90 in 0 : vector<1x128xf32>, vector<31x128xf32> -> vector<32x128xf32>
    %92 = vector.broadcast %12 : vector<32x1xf32> to vector<32x128xf32>
    %93 = arith.mulf %91, %92 : vector<32x128xf32>
    %94 = vector.extract_strided_slice %88 {offsets = [1, 0], sizes = [31, 128], strides = [1, 1]} : vector<32x128xf32> to vector<31x128xf32>
    %95 = tpu.concatenate %94, %89 in 0 : vector<31x128xf32>, vector<1x128xf32> -> vector<32x128xf32>
    %96 = vector.broadcast %14 : vector<32x1xf32> to vector<32x128xf32>
    %97 = arith.mulf %95, %96 : vector<32x128xf32>
    %98 = tpu.concatenate %93, %88, %97 in 1 : vector<32x128xf32>, vector<32x128xf32>, vector<32x128xf32> -> vector<32x384xf32>
    %99 = arith.truncf %98 : vector<32x384xf32> to vector<32x384xbf16>
    %c0_33 = arith.constant 0 : index
    %c0_34 = arith.constant 0 : index
    %100 = vector.load %arg11[%c0_33, %c0_34] : memref<384x128xbf16, #tpu.memory_space<vmem>>, vector<384x128xbf16>
    %cst_35 = arith.constant dense<0.000000e+00> : vector<32x128xf32>
    %101 = tpu.matmul %99, %100, %cst_35 {dimension_numbers = #tpu.dot_dimension_numbers<[1], [0], [0], [1], [0, 0, 1, 1], [], []>} : vector<32x384xbf16>, vector<384x128xbf16>, vector<32x128xf32> -> vector<32x128xf32>
    %c0_36 = arith.constant 0 : index
    %c0_37 = arith.constant 0 : index
    %102 = vector.load %arg12[%c0_36, %c0_37] : memref<1x128xf32, #tpu.memory_space<vmem>>, vector<1x128xf32>
    %103 = vector.broadcast %102 : vector<1x128xf32> to vector<32x128xf32>
    %104 = arith.mulf %101, %103 : vector<32x128xf32>
    %c0_38 = arith.constant 0 : index
    %c0_39 = arith.constant 0 : index
    %105 = vector.load %arg13[%c0_38, %c0_39] : memref<1x128xf32, #tpu.memory_space<vmem>>, vector<1x128xf32>
    %106 = vector.broadcast %105 : vector<1x128xf32> to vector<32x128xf32>
    %107 = arith.addf %104, %106 : vector<32x128xf32>
    %108 = arith.mulf %107, %107 : vector<32x128xf32>
    %109 = arith.mulf %107, %108 : vector<32x128xf32>
    %cst_40 = arith.constant 4.471500e-02 : f32
    %110 = vector.broadcast %cst_40 : f32 to vector<32x128xf32>
    %111 = arith.mulf %110, %109 : vector<32x128xf32>
    %112 = arith.addf %107, %111 : vector<32x128xf32>
    %cst_41 = arith.constant 0.797884583 : f32
    %113 = vector.broadcast %cst_41 : f32 to vector<32x128xf32>
    %114 = arith.mulf %113, %112 : vector<32x128xf32>
    %115 = math.tanh %114 : vector<32x128xf32>
    %cst_42 = arith.constant 1.000000e+00 : f32
    %116 = vector.broadcast %cst_42 : f32 to vector<32x128xf32>
    %117 = arith.addf %116, %115 : vector<32x128xf32>
    %cst_43 = arith.constant 5.000000e-01 : f32
    %118 = vector.broadcast %cst_43 : f32 to vector<32x128xf32>
    %119 = arith.mulf %118, %117 : vector<32x128xf32>
    %120 = arith.mulf %107, %119 : vector<32x128xf32>
    %cst_44 = arith.constant 0.000000e+00 : f32
    %121 = vector.broadcast %cst_44 : f32 to vector<1x128xf32>
    %122 = vector.extract_strided_slice %120 {offsets = [0, 0], sizes = [31, 128], strides = [1, 1]} : vector<32x128xf32> to vector<31x128xf32>
    %123 = tpu.concatenate %121, %122 in 0 : vector<1x128xf32>, vector<31x128xf32> -> vector<32x128xf32>
    %124 = vector.broadcast %12 : vector<32x1xf32> to vector<32x128xf32>
    %125 = arith.mulf %123, %124 : vector<32x128xf32>
    %126 = vector.extract_strided_slice %120 {offsets = [1, 0], sizes = [31, 128], strides = [1, 1]} : vector<32x128xf32> to vector<31x128xf32>
    %127 = tpu.concatenate %126, %121 in 0 : vector<31x128xf32>, vector<1x128xf32> -> vector<32x128xf32>
    %128 = vector.broadcast %14 : vector<32x1xf32> to vector<32x128xf32>
    %129 = arith.mulf %127, %128 : vector<32x128xf32>
    %130 = tpu.concatenate %125, %120, %129 in 1 : vector<32x128xf32>, vector<32x128xf32>, vector<32x128xf32> -> vector<32x384xf32>
    %131 = arith.truncf %130 : vector<32x384xf32> to vector<32x384xbf16>
    %c0_45 = arith.constant 0 : index
    %c0_46 = arith.constant 0 : index
    %132 = vector.load %arg14[%c0_45, %c0_46] : memref<384x128xbf16, #tpu.memory_space<vmem>>, vector<384x128xbf16>
    %cst_47 = arith.constant dense<0.000000e+00> : vector<32x128xf32>
    %133 = tpu.matmul %131, %132, %cst_47 {dimension_numbers = #tpu.dot_dimension_numbers<[1], [0], [0], [1], [0, 0, 1, 1], [], []>} : vector<32x384xbf16>, vector<384x128xbf16>, vector<32x128xf32> -> vector<32x128xf32>
    %c0_48 = arith.constant 0 : index
    %c0_49 = arith.constant 0 : index
    %134 = vector.load %arg15[%c0_48, %c0_49] : memref<1x128xf32, #tpu.memory_space<vmem>>, vector<1x128xf32>
    %135 = vector.broadcast %134 : vector<1x128xf32> to vector<32x128xf32>
    %136 = arith.mulf %133, %135 : vector<32x128xf32>
    %c0_50 = arith.constant 0 : index
    %c0_51 = arith.constant 0 : index
    %137 = vector.load %arg16[%c0_50, %c0_51] : memref<1x128xf32, #tpu.memory_space<vmem>>, vector<1x128xf32>
    %138 = vector.broadcast %137 : vector<1x128xf32> to vector<32x128xf32>
    %139 = arith.addf %136, %138 : vector<32x128xf32>
    %c0_52 = arith.constant 0 : index
    %c0_53 = arith.constant 0 : index
    %140 = vector.load %arg17[%c0_52, %c0_53] : memref<32x128xf32, #tpu.memory_space<vmem>>, vector<32x128xf32>
    tpu.vector_store %arg17[%c0_52, %c0_53], %139 {strides = array<i32>} : memref<32x128xf32, #tpu.memory_space<vmem>>, vector<32x128xf32>,
    return
  }
  func.func @transform_0(%arg0: i32) -> (i32, i32) {
    %c0_i32 = arith.constant 0 : i32
    %c0_i32_0 = arith.constant 0 : i32
    return %arg0, %c0_i32 : i32, i32
  }
  func.func @transform_1(%arg0: i32) -> (i32, i32) {
    %c0_i32 = arith.constant 0 : i32
    %c0_i32_0 = arith.constant 0 : i32
    return %arg0, %c0_i32 : i32, i32
  }
  func.func @transform_2(%arg0: i32) -> (i32, i32) {
    %c0_i32 = arith.constant 0 : i32
    %c0_i32_0 = arith.constant 0 : i32
    %c0_i32_1 = arith.constant 0 : i32
    return %c0_i32, %c0_i32_0 : i32, i32
  }
  func.func @transform_3(%arg0: i32) -> (i32, i32) {
    %c0_i32 = arith.constant 0 : i32
    %c0_i32_0 = arith.constant 0 : i32
    %c0_i32_1 = arith.constant 0 : i32
    return %c0_i32, %c0_i32_0 : i32, i32
  }
  func.func @transform_4(%arg0: i32) -> (i32, i32) {
    %c0_i32 = arith.constant 0 : i32
    %c0_i32_0 = arith.constant 0 : i32
    %c0_i32_1 = arith.constant 0 : i32
    return %c0_i32, %c0_i32_0 : i32, i32
  }
  func.func @transform_5(%arg0: i32) -> (i32, i32) {
    %c0_i32 = arith.constant 0 : i32
    %c0_i32_0 = arith.constant 0 : i32
    %c0_i32_1 = arith.constant 0 : i32
    return %c0_i32, %c0_i32_0 : i32, i32
  }
  func.func @transform_6(%arg0: i32) -> (i32, i32) {
    %c0_i32 = arith.constant 0 : i32
    %c0_i32_0 = arith.constant 0 : i32
    %c0_i32_1 = arith.constant 0 : i32
    return %c0_i32, %c0_i32_0 : i32, i32
  }
  func.func @transform_7(%arg0: i32) -> (i32, i32) {
    %c0_i32 = arith.constant 0 : i32
    %c0_i32_0 = arith.constant 0 : i32
    %c0_i32_1 = arith.constant 0 : i32
    return %c0_i32, %c0_i32_0 : i32, i32
  }
  func.func @transform_8(%arg0: i32) -> (i32, i32) {
    %c0_i32 = arith.constant 0 : i32
    %c0_i32_0 = arith.constant 0 : i32
    %c0_i32_1 = arith.constant 0 : i32
    return %c0_i32, %c0_i32_0 : i32, i32
  }
  func.func @transform_9(%arg0: i32) -> (i32, i32) {
    %c0_i32 = arith.constant 0 : i32
    %c0_i32_0 = arith.constant 0 : i32
    %c0_i32_1 = arith.constant 0 : i32
    return %c0_i32, %c0_i32_0 : i32, i32
  }
  func.func @transform_10(%arg0: i32) -> (i32, i32) {
    %c0_i32 = arith.constant 0 : i32
    %c0_i32_0 = arith.constant 0 : i32
    %c0_i32_1 = arith.constant 0 : i32
    return %c0_i32, %c0_i32_0 : i32, i32
  }
  func.func @transform_11(%arg0: i32) -> (i32, i32) {
    %c0_i32 = arith.constant 0 : i32
    %c0_i32_0 = arith.constant 0 : i32
    %c0_i32_1 = arith.constant 0 : i32
    return %c0_i32, %c0_i32_0 : i32, i32
  }
  func.func @transform_12(%arg0: i32) -> (i32, i32) {
    %c0_i32 = arith.constant 0 : i32
    %c0_i32_0 = arith.constant 0 : i32
    %c0_i32_1 = arith.constant 0 : i32
    return %c0_i32, %c0_i32_0 : i32, i32
  }
  func.func @transform_13(%arg0: i32) -> (i32, i32) {
    %c0_i32 = arith.constant 0 : i32
    %c0_i32_0 = arith.constant 0 : i32
    %c0_i32_1 = arith.constant 0 : i32
    return %c0_i32, %c0_i32_0 : i32, i32
  }
  func.func @transform_14(%arg0: i32) -> (i32, i32) {
    %c0_i32 = arith.constant 0 : i32
    %c0_i32_0 = arith.constant 0 : i32
    %c0_i32_1 = arith.constant 0 : i32
    return %c0_i32, %c0_i32_0 : i32, i32
  }
  func.func @transform_15(%arg0: i32) -> (i32, i32) {
    %c0_i32 = arith.constant 0 : i32
    %c0_i32_0 = arith.constant 0 : i32
    %c0_i32_1 = arith.constant 0 : i32
    return %c0_i32, %c0_i32_0 : i32, i32
  }
  func.func @transform_16(%arg0: i32) -> (i32, i32) {
    %c0_i32 = arith.constant 0 : i32
    %c0_i32_0 = arith.constant 0 : i32
    return %arg0, %c0_i32 : i32, i32
  }
}

</mosaic_0001>

<llo_original>
// kernel: upsample_forward.1
$region0: #{upsample_forward.1}
  #allocation0 [shape = 'u32[]', space=smem, size = 0x4, offset = 0x4, fixed_abs, tag = 'smem constant byte address 0x4 - core index']
  #allocation1 [shape = 'u32[72,128]{1,0:T(1,128)}', space=vmem, size = 0x9000, scoped, tag = 'internal scratch']
  %s0 = inlined_call_operand.vmem [shape: f32[16,32], index: 0, kind: input, shape index: {}]
  %s1 = inlined_call_operand.vmem [shape: f32[32,64], index: 1, kind: input, shape index: {}]
  %s2 = inlined_call_operand.vmem [shape: bf16[32,16], index: 2, kind: input, shape index: {}]
  %s3 = inlined_call_operand.vmem [shape: bf16[32,64], index: 3, kind: input, shape index: {}]
  %s4 = inlined_call_operand.vmem [shape: bf16[384,128], index: 4, kind: input, shape index: {}]
  %s5 = inlined_call_operand.vmem [shape: f32[1,128], index: 5, kind: input, shape index: {}]
  %s6 = inlined_call_operand.vmem [shape: f32[1,128], index: 6, kind: input, shape index: {}]
  %s7 = inlined_call_operand.vmem [shape: bf16[384,128], index: 7, kind: input, shape index: {}]
  %s8 = inlined_call_operand.vmem [shape: f32[1,128], index: 8, kind: input, shape index: {}]
  %s9 = inlined_call_operand.vmem [shape: f32[1,128], index: 9, kind: input, shape index: {}]
  %s10 = inlined_call_operand.vmem [shape: bf16[384,128], index: 10, kind: input, shape index: {}]
  %s11 = inlined_call_operand.vmem [shape: f32[1,128], index: 11, kind: input, shape index: {}]
  %s12 = inlined_call_operand.vmem [shape: f32[1,128], index: 12, kind: input, shape index: {}]
  %s13 = inlined_call_operand.vmem [shape: bf16[384,128], index: 13, kind: input, shape index: {}]
  %s14 = inlined_call_operand.vmem [shape: f32[1,128], index: 14, kind: input, shape index: {}]
  %s15 = inlined_call_operand.vmem [shape: f32[1,128], index: 15, kind: input, shape index: {}]
  %s16 = inlined_call_operand.vmem [shape: f32[32,128], index: 16, kind: output, shape index: {}]
  %s17 = sld [smem:[#allocation0]]
  $region74: #{upsample_forward.1} parent=0
    _
  %s19 = ssub.s32 1, %s17
  %s20 = scalar_select 0, %s19, %s17
  // Predicated region
  $region2: #{upsample_forward.1} parent=0 // pred_check
    _
  $region3: #{upsample_forward.1} parent=0 // pred_check_branch
    %22 = sbr.rel (0) target = $region5
  $region4: #{upsample_forward.1} parent=0 // pred_region
    _
  $region5: #{upsample_forward.1} parent=0 // pred_fallthru
    _
  // Predicated region
  $region6: #{upsample_forward.1} parent=0 // pred_check
    _
  $region7: #{upsample_forward.1} parent=0 // pred_check_branch
    %24 = sbr.rel (0) target = $region9
  $region8: #{upsample_forward.1} parent=0 // pred_region
    _
  $region9: #{upsample_forward.1} parent=0 // pred_fallthru
    _
  // Predicated region
  $region10: #{upsample_forward.1} parent=0 // pred_check
    _
  $region11: #{upsample_forward.1} parent=0 // pred_check_branch
    %26 = sbr.rel (0) target = $region13
  $region12: #{upsample_forward.1} parent=0 // pred_region
    _
  $region13: #{upsample_forward.1} parent=0 // pred_fallthru
    _
  // Predicated region
  $region14: #{upsample_forward.1} parent=0 // pred_check
    _
  $region15: #{upsample_forward.1} parent=0 // pred_check_branch
    %28 = sbr.rel (0) target = $region17
  $region16: #{upsample_forward.1} parent=0 // pred_region
    _
  $region17: #{upsample_forward.1} parent=0 // pred_fallthru
    _
  // Predicated region
  $region18: #{upsample_forward.1} parent=0 // pred_check
    _
  $region19: #{upsample_forward.1} parent=0 // pred_check_branch
    %30 = sbr.rel (0) target = $region21
  $region20: #{upsample_forward.1} parent=0 // pred_region
    _
  $region21: #{upsample_forward.1} parent=0 // pred_fallthru
    _
  // Predicated region
  $region22: #{upsample_forward.1} parent=0 // pred_check
    _
  $region23: #{upsample_forward.1} parent=0 // pred_check_branch
    %32 = sbr.rel (0) target = $region25
  $region24: #{upsample_forward.1} parent=0 // pred_region
    _
  $region25: #{upsample_forward.1} parent=0 // pred_fallthru
    _
  // Predicated region
  $region26: #{upsample_forward.1} parent=0 // pred_check
    _
  $region27: #{upsample_forward.1} parent=0 // pred_check_branch
    %34 = sbr.rel (0) target = $region29
  $region28: #{upsample_forward.1} parent=0 // pred_region
    _
  $region29: #{upsample_forward.1} parent=0 // pred_fallthru
    _
  // Predicated region
  $region30: #{upsample_forward.1} parent=0 // pred_check
    _
  $region31: #{upsample_forward.1} parent=0 // pred_check_branch
    %36 = sbr.rel (0) target = $region33
  $region32: #{upsample_forward.1} parent=0 // pred_region
    _
  $region33: #{upsample_forward.1} parent=0 // pred_fallthru
    _
  // Predicated region
  $region34: #{upsample_forward.1} parent=0 // pred_check
    _
  $region35: #{upsample_forward.1} parent=0 // pred_check_branch
    %38 = sbr.rel (0) target = $region37
  $region36: #{upsample_forward.1} parent=0 // pred_region
    _
  $region37: #{upsample_forward.1} parent=0 // pred_fallthru
    _
  // Predicated region
  $region38: #{upsample_forward.1} parent=0 // pred_check
    _
  $region39: #{upsample_forward.1} parent=0 // pred_check_branch
    %40 = sbr.rel (0) target = $region41
  $region40: #{upsample_forward.1} parent=0 // pred_region
    _
  $region41: #{upsample_forward.1} parent=0 // pred_fallthru
    _
  // Predicated region
  $region42: #{upsample_forward.1} parent=0 // pred_check
    _
  $region43: #{upsample_forward.1} parent=0 // pred_check_branch
    %42 = sbr.rel (0) target = $region45
  $region44: #{upsample_forward.1} parent=0 // pred_region
    _
  $region45: #{upsample_forward.1} parent=0 // pred_fallthru
    _
  // Predicated region
  $region46: #{upsample_forward.1} parent=0 // pred_check
    _
  $region47: #{upsample_forward.1} parent=0 // pred_check_branch
    %44 = sbr.rel (0) target = $region49
  $region48: #{upsample_forward.1} parent=0 // pred_region
    _
  $region49: #{upsample_forward.1} parent=0 // pred_fallthru
    _
  // Predicated region
  $region50: #{upsample_forward.1} parent=0 // pred_check
    _
  $region51: #{upsample_forward.1} parent=0 // pred_check_branch
    %46 = sbr.rel (0) target = $region53
  $region52: #{upsample_forward.1} parent=0 // pred_region
    _
  $region53: #{upsample_forward.1} parent=0 // pred_fallthru
    _
  // Predicated region
  $region54: #{upsample_forward.1} parent=0 // pred_check
    _
  $region55: #{upsample_forward.1} parent=0 // pred_check_branch
    %48 = sbr.rel (0) target = $region57
  $region56: #{upsample_forward.1} parent=0 // pred_region
    _
  $region57: #{upsample_forward.1} parent=0 // pred_fallthru
    _
  // Predicated region
  $region58: #{upsample_forward.1} parent=0 // pred_check
    _
  $region59: #{upsample_forward.1} parent=0 // pred_check_branch
    %50 = sbr.rel (0) target = $region61
  $region60: #{upsample_forward.1} parent=0 // pred_region
    _
  $region61: #{upsample_forward.1} parent=0 // pred_fallthru
    _
  // Predicated region
  $region62: #{upsample_forward.1} parent=0 // pred_check
    _
  $region63: #{upsample_forward.1} parent=0 // pred_check_branch
    %52 = sbr.rel (0) target = $region65
  $region64: #{upsample_forward.1} parent=0 // pred_region
    _
  $region65: #{upsample_forward.1} parent=0 // pred_fallthru
    _
  %v54 = vlaneseq
  %v55 = vshrl.u32 %v54, 7
  %v56 = vadd.s32 %v55, 8
  %v57 = vadd.s32 %v55, 16
  %v58 = vadd.s32 %v55, 24
  %vm59 = vcmp.ne.s32.totalorder %v55, 0
  %vm60 = vcmp.ne.s32.totalorder %v56, 0
  %vm61 = vcmp.ne.s32.totalorder %v57, 0
  %vm62 = vcmp.ne.s32.totalorder %v58, 0
  %vm63 = vcmp.ne.s32.totalorder %v55, 15
  %vm64 = vcmp.ne.s32.totalorder %v56, 15
  %vm65 = vcmp.ne.s32.totalorder %v57, 15
  %vm66 = vcmp.ne.s32.totalorder %v58, 15
  %vm67 = vcmp.ne.s32.totalorder %v55, 16
  %vm68 = vcmp.ne.s32.totalorder %v56, 16
  %vm69 = vcmp.ne.s32.totalorder %v57, 16
  %vm70 = vcmp.ne.s32.totalorder %v58, 16
  %vm71 = vmand %vm59, %vm67
  %vm72 = vmand %vm60, %vm68
  %vm73 = vmand %vm61, %vm69
  %vm74 = vmand %vm62, %vm70
  %vm75 = vcmp.ne.s32.totalorder %v55, 31
  %vm76 = vcmp.ne.s32.totalorder %v56, 31
  %vm77 = vcmp.ne.s32.totalorder %v57, 31
  %vm78 = vcmp.ne.s32.totalorder %v58, 31
  %vm79 = vmand %vm63, %vm75
  %vm80 = vmand %vm64, %vm76
  %vm81 = vmand %vm65, %vm77
  %vm82 = vmand %vm66, %vm78
  %v83 = vsel %vm71, 1, 0
  %v84 = vsel %vm72, 1, 0
  %v85 = vsel %vm73, 1, 0
  %v86 = vsel %vm74, 1, 0
  %v87 = vcvt.s32.f32 %v83
  %v88 = vcvt.s32.f32 %v84
  %v89 = vcvt.s32.f32 %v85
  %v90 = vcvt.s32.f32 %v86
  %v91 = vsel %vm79, 1, 0
  %v92 = vsel %vm80, 1, 0
  %v93 = vsel %vm81, 1, 0
  %v94 = vsel %vm82, 1, 0
  %v95 = vcvt.s32.f32 %v91
  %v96 = vcvt.s32.f32 %v92
  %v97 = vcvt.s32.f32 %v93
  %v98 = vcvt.s32.f32 %v94
  %v99 = vld [vmem:[%s0] sm:$0xff]
  %v100 = vld [vmem:[%s0 + $0x8] sm:$0xff]
  %v101 = vpack.c.bf16 %v100, %v99
  %v102 = vld [vmem:[%s2] sm:$0xf]
  %v103 = vld [vmem:[%s2 + $0x4] sm:$0xf]
  %v104 = vld [vmem:[%s2 + $0x8] sm:$0xf]
  %v105 = vld [vmem:[%s2 + $0xc] sm:$0xf]
  %v110 = vunpack.c.l.b16 %v102
  %v111 = vunpack.c.l.b16 %v103
  %v112 = vunpack.c.l.b16 %v104
  %v113 = vunpack.c.l.b16 %v105
  %v114 = vpack.c.b16 %v111, %v110
  %v115 = vpack.c.b16 %v113, %v112
  %vm116 = vcmask 130048
  %v118 = vsel %vm116, %v114, 0
  %v121 = vsel %vm116, %v115, 0
  %123 = vmatpush.bf16.msra.mxu0 0
  %124 = vmatpush.bf16.msra.mxu0 0
  %125 = vmatpush.bf16.msra.mxu0 0
  %126 = vmatpush.bf16.msra.mxu0 0
  %127 = vmatpush.bf16.msra.mxu0 0
  %128 = vmatpush.bf16.msra.mxu0 0
  %129 = vmatpush.bf16.msra.mxu0 0
  %130 = vmatpush.bf16.msra.mxu0 %v101
  %131 = vmatmul.bf16.gmra.mxu0 %v118
  %v132 = vpop.f32.mrf.mxu0
  %v133 = vadd.f32 0.0, %v132
  %v134 = vpop.f32.mrf.mxu0
  %v135 = vadd.f32 0.0, %v134
  %136 = vmatmul.bf16.gmra.mxu0 %v121
  %v137 = vpop.f32.mrf.mxu0
  %v138 = vadd.f32 0.0, %v137
  %v139 = vpop.f32.mrf.mxu0
  %v140 = vadd.f32 0.0, %v139
  %141 = vdwg.mxu0
  %v142 = vpack.c.bf16 %v135, %v133
  %v143 = vpack.c.bf16 %v140, %v138
  %v144 = vld [vmem:[%s3] sm:$0xf]
  %v145 = vld [vmem:[%s3 + $0x4] sm:$0xf]
  %v146 = vld [vmem:[%s3 + $0x8] sm:$0xf]
  %v147 = vld [vmem:[%s3 + $0xc] sm:$0xf]
  %v152 = vunpack.c.l.b16 %v144
  %v153 = vunpack.c.l.b16 %v145
  %v154 = vunpack.c.l.b16 %v146
  %v155 = vunpack.c.l.b16 %v147
  %v156 = vpack.c.b16 %v153, %v152
  %v157 = vpack.c.b16 %v155, %v154
  %vm160 = vcmask 261120
  %v162 = vsel %vm160, %v142, 0
  %v165 = vsel %vm160, %v143, 0
  %167 = vmatpush.bf16.msra.mxu0 0
  %168 = vmatpush.bf16.msra.mxu0 0
  %169 = vmatpush.bf16.msra.mxu0 0
  %170 = vmatpush.bf16.msra.mxu0 0
  %171 = vmatpush.bf16.msra.mxu0 0
  %172 = vmatpush.bf16.msra.mxu0 0
  %173 = vmatpush.bf16.msra.mxu0 %v157
  %174 = vmatpush.bf16.msra.mxu0 %v156
  %175 = vmatmul.bf16.gmra.mxu0 %v162
  %v176 = vpop.f32.mrf.mxu0
  %v177 = vadd.f32 0.0, %v176
  %v178 = vpop.f32.mrf.mxu0
  %v179 = vadd.f32 0.0, %v178
  %180 = vmatmul.bf16.gmra.mxu0 %v165
  %v181 = vpop.f32.mrf.mxu0
  %v182 = vadd.f32 0.0, %v181
  %v183 = vpop.f32.mrf.mxu0
  %v184 = vadd.f32 0.0, %v183
  %185 = vdwg.mxu0
  %v186 = vld [vmem:[%s1] sm:$0xff]
  %v187 = vld [vmem:[%s1 + $0x8] sm:$0xff]
  %v188 = vld [vmem:[%s1 + $0x10] sm:$0xff]
  %v189 = vld [vmem:[%s1 + $0x18] sm:$0xff]
  %194 = vrot.lane.b32.xlu0 %v177, 64
  %v195 = vpop.permute.xlu0 %194
  %196 = vrot.lane.b32.xlu0 %v179, 64
  %v197 = vpop.permute.xlu0 %196
  %198 = vrot.lane.b32.xlu0 %v182, 64
  %v199 = vpop.permute.xlu0 %198
  %200 = vrot.lane.b32.xlu0 %v184, 64
  %v201 = vpop.permute.xlu0 %200
  %vm206 = vcmask 523264
  %v207 = vsel %vm206, %v186, %v195
  %v208 = vsel %vm206, %v187, %v197
  %v209 = vsel %vm206, %v188, %v199
  %v210 = vsel %vm206, %v189, %v201
  %vm215 = vcmask 1040384
  %v216 = vrot.slane %v207, 7
  %v217 = vrot.slane %v208, 7
  %v218 = vsel %vm215, %v216, %v217
  %v219 = vrot.slane %v209, 7
  %v220 = vsel %vm215, %v217, %v219
  %v221 = vrot.slane %v210, 7
  %v222 = vsel %vm215, %v219, %v221
  %v227 = vsel %vm215, 0.0, %v216
  %v228 = vmul.f32 %v227, %v87
  %v229 = vmul.f32 %v218, %v88
  %v230 = vmul.f32 %v220, %v89
  %v231 = vmul.f32 %v222, %v90
  %vm232 = vcmask 1046528
  %v233 = vrot.slane %v207, 1
  %v234 = vrot.slane %v208, 1
  %v235 = vsel %vm232, %v233, %v234
  %v236 = vrot.slane %v209, 1
  %v237 = vsel %vm232, %v234, %v236
  %v238 = vrot.slane %v210, 1
  %v239 = vsel %vm232, %v236, %v238
  %v244 = vsel %vm232, %v238, 0.0
  %v245 = vmul.f32 %v235, %v95
  %v246 = vmul.f32 %v237, %v96
  %v247 = vmul.f32 %v239, %v97
  %v248 = vmul.f32 %v244, %v98
  %v249 = vpack.c.bf16 %v229, %v228
  %v250 = vpack.c.bf16 %v208, %v207
  %v251 = vpack.c.bf16 %v246, %v245
  %v252 = vpack.c.bf16 %v231, %v230
  %v253 = vpack.c.bf16 %v210, %v209
  %v254 = vpack.c.bf16 %v248, %v247
  %v255 = vld [vmem:[%s4] sm:$0xf]
  %v256 = vld [vmem:[%s4 + $0x4] sm:$0xf]
  %v257 = vld [vmem:[%s4 + $0x8] sm:$0xf]
  %v258 = vld [vmem:[%s4 + $0xc] sm:$0xf]
  %v259 = vld [vmem:[%s4 + $0x10] sm:$0xf]
  %v260 = vld [vmem:[%s4 + $0x14] sm:$0xf]
  %v261 = vld [vmem:[%s4 + $0x18] sm:$0xf]
  %v262 = vld [vmem:[%s4 + $0x1c] sm:$0xf]
  %v263 = vld [vmem:[%s4 + $0x20] sm:$0xf]
  %v264 = vld [vmem:[%s4 + $0x24] sm:$0xf]
  %v265 = vld [vmem:[%s4 + $0x28] sm:$0xf]
  %v266 = vld [vmem:[%s4 + $0x2c] sm:$0xf]
  %v267 = vld [vmem:[%s4 + $0x30] sm:$0xf]
  %v268 = vld [vmem:[%s4 + $0x34] sm:$0xf]
  %v269 = vld [vmem:[%s4 + $0x38] sm:$0xf]
  %v270 = vld [vmem:[%s4 + $0x3c] sm:$0xf]
  %v271 = vld [vmem:[%s4 + $0x40] sm:$0xf]
  %v272 = vld [vmem:[%s4 + $0x44] sm:$0xf]
  %v273 = vld [vmem:[%s4 + $0x48] sm:$0xf]
  %v274 = vld [vmem:[%s4 + $0x4c] sm:$0xf]
  %v275 = vld [vmem:[%s4 + $0x50] sm:$0xf]
  %v276 = vld [vmem:[%s4 + $0x54] sm:$0xf]
  %v277 = vld [vmem:[%s4 + $0x58] sm:$0xf]
  %v278 = vld [vmem:[%s4 + $0x5c] sm:$0xf]
  %v279 = vld [vmem:[%s4 + $0x60] sm:$0xf]
  %v280 = vld [vmem:[%s4 + $0x64] sm:$0xf]
  %v281 = vld [vmem:[%s4 + $0x68] sm:$0xf]
  %v282 = vld [vmem:[%s4 + $0x6c] sm:$0xf]
  %v283 = vld [vmem:[%s4 + $0x70] sm:$0xf]
  %v284 = vld [vmem:[%s4 + $0x74] sm:$0xf]
  %v285 = vld [vmem:[%s4 + $0x78] sm:$0xf]
  %v286 = vld [vmem:[%s4 + $0x7c] sm:$0xf]
  %v287 = vld [vmem:[%s4 + $0x80] sm:$0xf]
  %v288 = vld [vmem:[%s4 + $0x84] sm:$0xf]
  %v289 = vld [vmem:[%s4 + $0x88] sm:$0xf]
  %v290 = vld [vmem:[%s4 + $0x8c] sm:$0xf]
  %v291 = vld [vmem:[%s4 + $0x90] sm:$0xf]
  %v292 = vld [vmem:[%s4 + $0x94] sm:$0xf]
  %v293 = vld [vmem:[%s4 + $0x98] sm:$0xf]
  %v294 = vld [vmem:[%s4 + $0x9c] sm:$0xf]
  %v295 = vld [vmem:[%s4 + $0xa0] sm:$0xf]
  %v296 = vld [vmem:[%s4 + $0xa4] sm:$0xf]
  %v297 = vld [vmem:[%s4 + $0xa8] sm:$0xf]
  %v298 = vld [vmem:[%s4 + $0xac] sm:$0xf]
  %v299 = vld [vmem:[%s4 + $0xb0] sm:$0xf]
  %v300 = vld [vmem:[%s4 + $0xb4] sm:$0xf]
  %v301 = vld [vmem:[%s4 + $0xb8] sm:$0xf]
  %v302 = vld [vmem:[%s4 + $0xbc] sm:$0xf]
  %v351 = vunpack.c.l.b16 %v255
  %v352 = vunpack.c.l.b16 %v256
  %v353 = vunpack.c.l.b16 %v257
  %v354 = vunpack.c.l.b16 %v258
  %v355 = vunpack.c.l.b16 %v259
  %v356 = vunpack.c.l.b16 %v260
  %v357 = vunpack.c.l.b16 %v261
  %v358 = vunpack.c.l.b16 %v262
  %v359 = vunpack.c.l.b16 %v263
  %v360 = vunpack.c.l.b16 %v264
  %v361 = vunpack.c.l.b16 %v265
  %v362 = vunpack.c.l.b16 %v266
  %v363 = vunpack.c.l.b16 %v267
  %v364 = vunpack.c.l.b16 %v268
  %v365 = vunpack.c.l.b16 %v269
  %v366 = vunpack.c.l.b16 %v270
  %v367 = vunpack.c.l.b16 %v271
  %v368 = vunpack.c.l.b16 %v272
  %v369 = vunpack.c.l.b16 %v273
  %v370 = vunpack.c.l.b16 %v274
  %v371 = vunpack.c.l.b16 %v275
  %v372 = vunpack.c.l.b16 %v276
  %v373 = vunpack.c.l.b16 %v277
  %v374 = vunpack.c.l.b16 %v278
  %v375 = vunpack.c.l.b16 %v279
  %v376 = vunpack.c.l.b16 %v280
  %v377 = vunpack.c.l.b16 %v281
  %v378 = vunpack.c.l.b16 %v282
  %v379 = vunpack.c.l.b16 %v283
  %v380 = vunpack.c.l.b16 %v284
  %v381 = vunpack.c.l.b16 %v285
  %v382 = vunpack.c.l.b16 %v286
  %v383 = vunpack.c.l.b16 %v287
  %v384 = vunpack.c.l.b16 %v288
  %v385 = vunpack.c.l.b16 %v289
  %v386 = vunpack.c.l.b16 %v290
  %v387 = vunpack.c.l.b16 %v291
  %v388 = vunpack.c.l.b16 %v292
  %v389 = vunpack.c.l.b16 %v293
  %v390 = vunpack.c.l.b16 %v294
  %v391 = vunpack.c.l.b16 %v295
  %v392 = vunpack.c.l.b16 %v296
  %v393 = vunpack.c.l.b16 %v297
  %v394 = vunpack.c.l.b16 %v298
  %v395 = vunpack.c.l.b16 %v299
  %v396 = vunpack.c.l.b16 %v300
  %v397 = vunpack.c.l.b16 %v301
  %v398 = vunpack.c.l.b16 %v302
  %v399 = vpack.c.b16 %v352, %v351
  %v400 = vpack.c.b16 %v354, %v353
  %v401 = vpack.c.b16 %v356, %v355
  %v402 = vpack.c.b16 %v358, %v357
  %v403 = vpack.c.b16 %v360, %v359
  %v404 = vpack.c.b16 %v362, %v361
  %v405 = vpack.c.b16 %v364, %v363
  %v406 = vpack.c.b16 %v366, %v365
  %v407 = vpack.c.b16 %v368, %v367
  %v408 = vpack.c.b16 %v370, %v369
  %v409 = vpack.c.b16 %v372, %v371
  %v410 = vpack.c.b16 %v374, %v373
  %v411 = vpack.c.b16 %v376, %v375
  %v412 = vpack.c.b16 %v378, %v377
  %v413 = vpack.c.b16 %v380, %v379
  %v414 = vpack.c.b16 %v382, %v381
  %v415 = vpack.c.b16 %v384, %v383
  %v416 = vpack.c.b16 %v386, %v385
  %v417 = vpack.c.b16 %v388, %v387
  %v418 = vpack.c.b16 %v390, %v389
  %v419 = vpack.c.b16 %v392, %v391
  %v420 = vpack.c.b16 %v394, %v393
  %v421 = vpack.c.b16 %v396, %v395
  %v422 = vpack.c.b16 %v398, %v397
  %447 = vmatpush.bf16.msra.mxu0 %v406
  %448 = vmatpush.bf16.msra.mxu0 %v405
  %449 = vmatpush.bf16.msra.mxu0 %v404
  %450 = vmatpush.bf16.msra.mxu0 %v403
  %451 = vmatpush.bf16.msra.mxu0 %v402
  %452 = vmatpush.bf16.msra.mxu0 %v401
  %453 = vmatpush.bf16.msra.mxu0 %v400
  %454 = vmatpush.bf16.msra.mxu0 %v399
  %455 = vmatmul.bf16.gmra.mxu0 %v249
  %v456 = vpop.f32.mrf.mxu0
  %v457 = vadd.f32 0.0, %v456
  %v458 = vpop.f32.mrf.mxu0
  %v459 = vadd.f32 0.0, %v458
  %460 = vmatmul.bf16.gmra.mxu0 %v252
  %v461 = vpop.f32.mrf.mxu0
  %v462 = vadd.f32 0.0, %v461
  %v463 = vpop.f32.mrf.mxu0
  %v464 = vadd.f32 0.0, %v463
  %465 = vdwg.mxu0
  %466 = vmatpush.bf16.msra.mxu0 %v414
  %467 = vmatpush.bf16.msra.mxu0 %v413
  %468 = vmatpush.bf16.msra.mxu0 %v412
  %469 = vmatpush.bf16.msra.mxu0 %v411
  %470 = vmatpush.bf16.msra.mxu0 %v410
  %471 = vmatpush.bf16.msra.mxu0 %v409
  %472 = vmatpush.bf16.msra.mxu0 %v408
  %473 = vmatpush.bf16.msra.mxu0 %v407
  %474 = vmatmul.bf16.gmra.mxu0 %v250
  %v475 = vpop.f32.mrf.mxu0
  %v476 = vadd.f32 %v457, %v475
  %v477 = vpop.f32.mrf.mxu0
  %v478 = vadd.f32 %v459, %v477
  %479 = vmatmul.bf16.gmra.mxu0 %v253
  %v480 = vpop.f32.mrf.mxu0
  %v481 = vadd.f32 %v462, %v480
  %v482 = vpop.f32.mrf.mxu0
  %v483 = vadd.f32 %v464, %v482
  %484 = vdwg.mxu0
  %485 = vmatpush.bf16.msra.mxu0 %v422
  %486 = vmatpush.bf16.msra.mxu0 %v421
  %487 = vmatpush.bf16.msra.mxu0 %v420
  %488 = vmatpush.bf16.msra.mxu0 %v419
  %489 = vmatpush.bf16.msra.mxu0 %v418
  %490 = vmatpush.bf16.msra.mxu0 %v417
  %491 = vmatpush.bf16.msra.mxu0 %v416
  %492 = vmatpush.bf16.msra.mxu0 %v415
  %493 = vmatmul.bf16.gmra.mxu0 %v251
  %v494 = vpop.f32.mrf.mxu0
  %v495 = vadd.f32 %v476, %v494
  %v496 = vpop.f32.mrf.mxu0
  %v497 = vadd.f32 %v478, %v496
  %498 = vmatmul.bf16.gmra.mxu0 %v254
  %v499 = vpop.f32.mrf.mxu0
  %v500 = vadd.f32 %v481, %v499
  %v501 = vpop.f32.mrf.mxu0
  %v502 = vadd.f32 %v483, %v501
  %503 = vdwg.mxu0
  %v504 = vld [vmem:[%s5] sm:$0x1]
  %v506 = vperm.slane %v504, 0
  %v508 = vmul.f32 %v495, %v506
  %v509 = vmul.f32 %v497, %v506
  %v510 = vmul.f32 %v500, %v506
  %v511 = vmul.f32 %v502, %v506
  %v512 = vld [vmem:[%s6] sm:$0x1]
  %v514 = vperm.slane %v512, 0
  %v516 = vadd.f32 %v508, %v514
  %v517 = vadd.f32 %v509, %v514
  %v518 = vadd.f32 %v510, %v514
  %v519 = vadd.f32 %v511, %v514
  %v520 = vmul.f32 %v516, %v516
  %v521 = vmul.f32 %v517, %v517
  %v522 = vmul.f32 %v518, %v518
  %v523 = vmul.f32 %v519, %v519
  %v524 = vmul.f32 %v516, %v520
  %v525 = vmul.f32 %v517, %v521
  %v526 = vmul.f32 %v518, %v522
  %v527 = vmul.f32 %v519, %v523
  %v528 = vmul.f32 %v524, 0.044715
  %v529 = vmul.f32 %v525, 0.044715
  %v530 = vmul.f32 %v526, 0.044715
  %v531 = vmul.f32 %v527, 0.044715
  %v532 = vadd.f32 %v516, %v528
  %v533 = vadd.f32 %v517, %v529
  %v534 = vadd.f32 %v518, %v530
  %v535 = vadd.f32 %v519, %v531
  %v536 = vmul.f32 %v532, 0.7978846
  %v537 = vmul.f32 %v533, 0.7978846
  %v538 = vmul.f32 %v534, 0.7978846
  %v539 = vmul.f32 %v535, 0.7978846
  %v540 = vtanh.pop %v536
  %v541 = vtanh.pop %v537
  %v542 = vtanh.pop %v538
  %v543 = vtanh.pop %v539
  %v544 = vadd.f32 %v540, 1.0
  %v545 = vadd.f32 %v541, 1.0
  %v546 = vadd.f32 %v542, 1.0
  %v547 = vadd.f32 %v543, 1.0
  %v548 = vmul.f32 %v544, 0.5
  %v549 = vmul.f32 %v545, 0.5
  %v550 = vmul.f32 %v546, 0.5
  %v551 = vmul.f32 %v547, 0.5
  %v552 = vmul.f32 %v516, %v548
  %v553 = vmul.f32 %v517, %v549
  %v554 = vmul.f32 %v518, %v550
  %v555 = vmul.f32 %v519, %v551
  %v560 = vrot.slane %v552, 7
  %v561 = vrot.slane %v553, 7
  %v562 = vsel %vm215, %v560, %v561
  %v563 = vrot.slane %v554, 7
  %v564 = vsel %vm215, %v561, %v563
  %v565 = vrot.slane %v555, 7
  %v566 = vsel %vm215, %v563, %v565
  %v571 = vsel %vm215, 0.0, %v560
  %v572 = vmul.f32 %v571, %v87
  %v573 = vmul.f32 %v562, %v88
  %v574 = vmul.f32 %v564, %v89
  %v575 = vmul.f32 %v566, %v90
  %v576 = vrot.slane %v552, 1
  %v577 = vrot.slane %v553, 1
  %v578 = vsel %vm232, %v576, %v577
  %v579 = vrot.slane %v554, 1
  %v580 = vsel %vm232, %v577, %v579
  %v581 = vrot.slane %v555, 1
  %v582 = vsel %vm232, %v579, %v581
  %v587 = vsel %vm232, %v581, 0.0
  %v588 = vmul.f32 %v578, %v95
  %v589 = vmul.f32 %v580, %v96
  %v590 = vmul.f32 %v582, %v97
  %v591 = vmul.f32 %v587, %v98
  %v592 = vpack.c.bf16 %v573, %v572
  %v593 = vpack.c.bf16 %v553, %v552
  %v594 = vpack.c.bf16 %v589, %v588
  %v595 = vpack.c.bf16 %v575, %v574
  %v596 = vpack.c.bf16 %v555, %v554
  %v597 = vpack.c.bf16 %v591, %v590
  %v598 = vld [vmem:[%s7] sm:$0xf]
  %v599 = vld [vmem:[%s7 + $0x4] sm:$0xf]
  %v600 = vld [vmem:[%s7 + $0x8] sm:$0xf]
  %v601 = vld [vmem:[%s7 + $0xc] sm:$0xf]
  %v602 = vld [vmem:[%s7 + $0x10] sm:$0xf]
  %v603 = vld [vmem:[%s7 + $0x14] sm:$0xf]
  %v604 = vld [vmem:[%s7 + $0x18] sm:$0xf]
  %v605 = vld [vmem:[%s7 + $0x1c] sm:$0xf]
  %v606 = vld [vmem:[%s7 + $0x20] sm:$0xf]
  %v607 = vld [vmem:[%s7 + $0x24] sm:$0xf]
  %v608 = vld [vmem:[%s7 + $0x28] sm:$0xf]
  %v609 = vld [vmem:[%s7 + $0x2c] sm:$0xf]
  %v610 = vld [vmem:[%s7 + $0x30] sm:$0xf]
  %v611 = vld [vmem:[%s7 + $0x34] sm:$0xf]
  %v612 = vld [vmem:[%s7 + $0x38] sm:$0xf]
  %v613 = vld [vmem:[%s7 + $0x3c] sm:$0xf]
  %v614 = vld [vmem:[%s7 + $0x40] sm:$0xf]
  %v615 = vld [vmem:[%s7 + $0x44] sm:$0xf]
  %v616 = vld [vmem:[%s7 + $0x48] sm:$0xf]
  %v617 = vld [vmem:[%s7 + $0x4c] sm:$0xf]
  %v618 = vld [vmem:[%s7 + $0x50] sm:$0xf]
  %v619 = vld [vmem:[%s7 + $0x54] sm:$0xf]
  %v620 = vld [vmem:[%s7 + $0x58] sm:$0xf]
  %v621 = vld [vmem:[%s7 + $0x5c] sm:$0xf]
  %v622 = vld [vmem:[%s7 + $0x60] sm:$0xf]
  %v623 = vld [vmem:[%s7 + $0x64] sm:$0xf]
  %v624 = vld [vmem:[%s7 + $0x68] sm:$0xf]
  %v625 = vld [vmem:[%s7 + $0x6c] sm:$0xf]
  %v626 = vld [vmem:[%s7 + $0x70] sm:$0xf]
  %v627 = vld [vmem:[%s7 + $0x74] sm:$0xf]
  %v628 = vld [vmem:[%s7 + $0x78] sm:$0xf]
  %v629 = vld [vmem:[%s7 + $0x7c] sm:$0xf]
  %v630 = vld [vmem:[%s7 + $0x80] sm:$0xf]
  %v631 = vld [vmem:[%s7 + $0x84] sm:$0xf]
  %v632 = vld [vmem:[%s7 + $0x88] sm:$0xf]
  %v633 = vld [vmem:[%s7 + $0x8c] sm:$0xf]
  %v634 = vld [vmem:[%s7 + $0x90] sm:$0xf]
  %v635 = vld [vmem:[%s7 + $0x94] sm:$0xf]
  %v636 = vld [vmem:[%s7 + $0x98] sm:$0xf]
  %v637 = vld [vmem:[%s7 + $0x9c] sm:$0xf]
  %v638 = vld [vmem:[%s7 + $0xa0] sm:$0xf]
  %v639 = vld [vmem:[%s7 + $0xa4] sm:$0xf]
  %v640 = vld [vmem:[%s7 + $0xa8] sm:$0xf]
  %v641 = vld [vmem:[%s7 + $0xac] sm:$0xf]
  %v642 = vld [vmem:[%s7 + $0xb0] sm:$0xf]
  %v643 = vld [vmem:[%s7 + $0xb4] sm:$0xf]
  %v644 = vld [vmem:[%s7 + $0xb8] sm:$0xf]
  %v645 = vld [vmem:[%s7 + $0xbc] sm:$0xf]
  %v694 = vunpack.c.l.b16 %v598
  %v695 = vunpack.c.l.b16 %v599
  %v696 = vunpack.c.l.b16 %v600
  %v697 = vunpack.c.l.b16 %v601
  %v698 = vunpack.c.l.b16 %v602
  %v699 = vunpack.c.l.b16 %v603
  %v700 = vunpack.c.l.b16 %v604
  %v701 = vunpack.c.l.b16 %v605
  %v702 = vunpack.c.l.b16 %v606
  %v703 = vunpack.c.l.b16 %v607
  %v704 = vunpack.c.l.b16 %v608
  %v705 = vunpack.c.l.b16 %v609
  %v706 = vunpack.c.l.b16 %v610
  %v707 = vunpack.c.l.b16 %v611
  %v708 = vunpack.c.l.b16 %v612
  %v709 = vunpack.c.l.b16 %v613
  %v710 = vunpack.c.l.b16 %v614
  %v711 = vunpack.c.l.b16 %v615
  %v712 = vunpack.c.l.b16 %v616
  %v713 = vunpack.c.l.b16 %v617
  %v714 = vunpack.c.l.b16 %v618
  %v715 = vunpack.c.l.b16 %v619
  %v716 = vunpack.c.l.b16 %v620
  %v717 = vunpack.c.l.b16 %v621
  %v718 = vunpack.c.l.b16 %v622
  %v719 = vunpack.c.l.b16 %v623
  %v720 = vunpack.c.l.b16 %v624
  %v721 = vunpack.c.l.b16 %v625
  %v722 = vunpack.c.l.b16 %v626
  %v723 = vunpack.c.l.b16 %v627
  %v724 = vunpack.c.l.b16 %v628
  %v725 = vunpack.c.l.b16 %v629
  %v726 = vunpack.c.l.b16 %v630
  %v727 = vunpack.c.l.b16 %v631
  %v728 = vunpack.c.l.b16 %v632
  %v729 = vunpack.c.l.b16 %v633
  %v730 = vunpack.c.l.b16 %v634
  %v731 = vunpack.c.l.b16 %v635
  %v732 = vunpack.c.l.b16 %v636
  %v733 = vunpack.c.l.b16 %v637
  %v734 = vunpack.c.l.b16 %v638
  %v735 = vunpack.c.l.b16 %v639
  %v736 = vunpack.c.l.b16 %v640
  %v737 = vunpack.c.l.b16 %v641
  %v738 = vunpack.c.l.b16 %v642
  %v739 = vunpack.c.l.b16 %v643
  %v740 = vunpack.c.l.b16 %v644
  %v741 = vunpack.c.l.b16 %v645
  %v742 = vpack.c.b16 %v695, %v694
  %v743 = vpack.c.b16 %v697, %v696
  %v744 = vpack.c.b16 %v699, %v698
  %v745 = vpack.c.b16 %v701, %v700
  %v746 = vpack.c.b16 %v703, %v702
  %v747 = vpack.c.b16 %v705, %v704
  %v748 = vpack.c.b16 %v707, %v706
  %v749 = vpack.c.b16 %v709, %v708
  %v750 = vpack.c.b16 %v711, %v710
  %v751 = vpack.c.b16 %v713, %v712
  %v752 = vpack.c.b16 %v715, %v714
  %v753 = vpack.c.b16 %v717, %v716
  %v754 = vpack.c.b16 %v719, %v718
  %v755 = vpack.c.b16 %v721, %v720
  %v756 = vpack.c.b16 %v723, %v722
  %v757 = vpack.c.b16 %v725, %v724
  %v758 = vpack.c.b16 %v727, %v726
  %v759 = vpack.c.b16 %v729, %v728
  %v760 = vpack.c.b16 %v731, %v730
  %v761 = vpack.c.b16 %v733, %v732
  %v762 = vpack.c.b16 %v735, %v734
  %v763 = vpack.c.b16 %v737, %v736
  %v764 = vpack.c.b16 %v739, %v738
  %v765 = vpack.c.b16 %v741, %v740
  %790 = vmatpush.bf16.msra.mxu0 %v749
  %791 = vmatpush.bf16.msra.mxu0 %v748
  %792 = vmatpush.bf16.msra.mxu0 %v747
  %793 = vmatpush.bf16.msra.mxu0 %v746
  %794 = vmatpush.bf16.msra.mxu0 %v745
  %795 = vmatpush.bf16.msra.mxu0 %v744
  %796 = vmatpush.bf16.msra.mxu0 %v743
  %797 = vmatpush.bf16.msra.mxu0 %v742
  %798 = vmatmul.bf16.gmra.mxu0 %v592
  %v799 = vpop.f32.mrf.mxu0
  %v800 = vadd.f32 0.0, %v799
  %v801 = vpop.f32.mrf.mxu0
  %v802 = vadd.f32 0.0, %v801
  %803 = vmatmul.bf16.gmra.mxu0 %v595
  %v804 = vpop.f32.mrf.mxu0
  %v805 = vadd.f32 0.0, %v804
  %v806 = vpop.f32.mrf.mxu0
  %v807 = vadd.f32 0.0, %v806
  %808 = vdwg.mxu0
  %809 = vmatpush.bf16.msra.mxu0 %v757
  %810 = vmatpush.bf16.msra.mxu0 %v756
  %811 = vmatpush.bf16.msra.mxu0 %v755
  %812 = vmatpush.bf16.msra.mxu0 %v754
  %813 = vmatpush.bf16.msra.mxu0 %v753
  %814 = vmatpush.bf16.msra.mxu0 %v752
  %815 = vmatpush.bf16.msra.mxu0 %v751
  %816 = vmatpush.bf16.msra.mxu0 %v750
  %817 = vmatmul.bf16.gmra.mxu0 %v593
  %v818 = vpop.f32.mrf.mxu0
  %v819 = vadd.f32 %v800, %v818
  %v820 = vpop.f32.mrf.mxu0
  %v821 = vadd.f32 %v802, %v820
  %822 = vmatmul.bf16.gmra.mxu0 %v596
  %v823 = vpop.f32.mrf.mxu0
  %v824 = vadd.f32 %v805, %v823
  %v825 = vpop.f32.mrf.mxu0
  %v826 = vadd.f32 %v807, %v825
  %827 = vdwg.mxu0
  %828 = vmatpush.bf16.msra.mxu0 %v765
  %829 = vmatpush.bf16.msra.mxu0 %v764
  %830 = vmatpush.bf16.msra.mxu0 %v763
  %831 = vmatpush.bf16.msra.mxu0 %v762
  %832 = vmatpush.bf16.msra.mxu0 %v761
  %833 = vmatpush.bf16.msra.mxu0 %v760
  %834 = vmatpush.bf16.msra.mxu0 %v759
  %835 = vmatpush.bf16.msra.mxu0 %v758
  %836 = vmatmul.bf16.gmra.mxu0 %v594
  %v837 = vpop.f32.mrf.mxu0
  %v838 = vadd.f32 %v819, %v837
  %v839 = vpop.f32.mrf.mxu0
  %v840 = vadd.f32 %v821, %v839
  %841 = vmatmul.bf16.gmra.mxu0 %v597
  %v842 = vpop.f32.mrf.mxu0
  %v843 = vadd.f32 %v824, %v842
  %v844 = vpop.f32.mrf.mxu0
  %v845 = vadd.f32 %v826, %v844
  %846 = vdwg.mxu0
  %v847 = vld [vmem:[%s8] sm:$0x1]
  %v849 = vperm.slane %v847, 0
  %v851 = vmul.f32 %v838, %v849
  %v852 = vmul.f32 %v840, %v849
  %v853 = vmul.f32 %v843, %v849
  %v854 = vmul.f32 %v845, %v849
  %v855 = vld [vmem:[%s9] sm:$0x1]
  %v857 = vperm.slane %v855, 0
  %v859 = vadd.f32 %v851, %v857
  %v860 = vadd.f32 %v852, %v857
  %v861 = vadd.f32 %v853, %v857
  %v862 = vadd.f32 %v854, %v857
  %v863 = vadd.f32 %v207, %v859
  %v864 = vadd.f32 %v208, %v860
  %v865 = vadd.f32 %v209, %v861
  %v866 = vadd.f32 %v210, %v862
  %v867 = vmul.f32 %v863, %v863
  %v868 = vmul.f32 %v864, %v864
  %v869 = vmul.f32 %v865, %v865
  %v870 = vmul.f32 %v866, %v866
  %v871 = vmul.f32 %v863, %v867
  %v872 = vmul.f32 %v864, %v868
  %v873 = vmul.f32 %v865, %v869
  %v874 = vmul.f32 %v866, %v870
  %v875 = vmul.f32 %v871, 0.044715
  %v876 = vmul.f32 %v872, 0.044715
  %v877 = vmul.f32 %v873, 0.044715
  %v878 = vmul.f32 %v874, 0.044715
  %v879 = vadd.f32 %v863, %v875
  %v880 = vadd.f32 %v864, %v876
  %v881 = vadd.f32 %v865, %v877
  %v882 = vadd.f32 %v866, %v878
  %v883 = vmul.f32 %v879, 0.7978846
  %v884 = vmul.f32 %v880, 0.7978846
  %v885 = vmul.f32 %v881, 0.7978846
  %v886 = vmul.f32 %v882, 0.7978846
  %v887 = vtanh.pop %v883
  %v888 = vtanh.pop %v884
  %v889 = vtanh.pop %v885
  %v890 = vtanh.pop %v886
  %v891 = vadd.f32 %v887, 1.0
  %v892 = vadd.f32 %v888, 1.0
  %v893 = vadd.f32 %v889, 1.0
  %v894 = vadd.f32 %v890, 1.0
  %v895 = vmul.f32 %v891, 0.5
  %v896 = vmul.f32 %v892, 0.5
  %v897 = vmul.f32 %v893, 0.5
  %v898 = vmul.f32 %v894, 0.5
  %v899 = vmul.f32 %v863, %v895
  %v900 = vmul.f32 %v864, %v896
  %v901 = vmul.f32 %v865, %v897
  %v902 = vmul.f32 %v866, %v898
  %v907 = vrot.slane %v899, 7
  %v908 = vrot.slane %v900, 7
  %v909 = vsel %vm215, %v907, %v908
  %v910 = vrot.slane %v901, 7
  %v911 = vsel %vm215, %v908, %v910
  %v912 = vrot.slane %v902, 7
  %v913 = vsel %vm215, %v910, %v912
  %v918 = vsel %vm215, 0.0, %v907
  %v919 = vmul.f32 %v918, %v87
  %v920 = vmul.f32 %v909, %v88
  %v921 = vmul.f32 %v911, %v89
  %v922 = vmul.f32 %v913, %v90
  %v923 = vrot.slane %v899, 1
  %v924 = vrot.slane %v900, 1
  %v925 = vsel %vm232, %v923, %v924
  %v926 = vrot.slane %v901, 1
  %v927 = vsel %vm232, %v924, %v926
  %v928 = vrot.slane %v902, 1
  %v929 = vsel %vm232, %v926, %v928
  %v934 = vsel %vm232, %v928, 0.0
  %v935 = vmul.f32 %v925, %v95
  %v936 = vmul.f32 %v927, %v96
  %v937 = vmul.f32 %v929, %v97
  %v938 = vmul.f32 %v934, %v98
  %v939 = vpack.c.bf16 %v920, %v919
  %v940 = vpack.c.bf16 %v900, %v899
  %v941 = vpack.c.bf16 %v936, %v935
  %v942 = vpack.c.bf16 %v922, %v921
  %v943 = vpack.c.bf16 %v902, %v901
  %v944 = vpack.c.bf16 %v938, %v937
  %v945 = vld [vmem:[%s10] sm:$0xf]
  %v946 = vld [vmem:[%s10 + $0x4] sm:$0xf]
  %v947 = vld [vmem:[%s10 + $0x8] sm:$0xf]
  %v948 = vld [vmem:[%s10 + $0xc] sm:$0xf]
  %v949 = vld [vmem:[%s10 + $0x10] sm:$0xf]
  %v950 = vld [vmem:[%s10 + $0x14] sm:$0xf]
  %v951 = vld [vmem:[%s10 + $0x18] sm:$0xf]
  %v952 = vld [vmem:[%s10 + $0x1c] sm:$0xf]
  %v953 = vld [vmem:[%s10 + $0x20] sm:$0xf]
  %v954 = vld [vmem:[%s10 + $0x24] sm:$0xf]
  %v955 = vld [vmem:[%s10 + $0x28] sm:$0xf]
  %v956 = vld [vmem:[%s10 + $0x2c] sm:$0xf]
  %v957 = vld [vmem:[%s10 + $0x30] sm:$0xf]
  %v958 = vld [vmem:[%s10 + $0x34] sm:$0xf]
  %v959 = vld [vmem:[%s10 + $0x38] sm:$0xf]
  %v960 = vld [vmem:[%s10 + $0x3c] sm:$0xf]
  %v961 = vld [vmem:[%s10 + $0x40] sm:$0xf]
  %v962 = vld [vmem:[%s10 + $0x44] sm:$0xf]
  %v963 = vld [vmem:[%s10 + $0x48] sm:$0xf]
  %v964 = vld [vmem:[%s10 + $0x4c] sm:$0xf]
  %v965 = vld [vmem:[%s10 + $0x50] sm:$0xf]
  %v966 = vld [vmem:[%s10 + $0x54] sm:$0xf]
  %v967 = vld [vmem:[%s10 + $0x58] sm:$0xf]
  %v968 = vld [vmem:[%s10 + $0x5c] sm:$0xf]
  %v969 = vld [vmem:[%s10 + $0x60] sm:$0xf]
  %v970 = vld [vmem:[%s10 + $0x64] sm:$0xf]
  %v971 = vld [vmem:[%s10 + $0x68] sm:$0xf]
  %v972 = vld [vmem:[%s10 + $0x6c] sm:$0xf]
  %v973 = vld [vmem:[%s10 + $0x70] sm:$0xf]
  %v974 = vld [vmem:[%s10 + $0x74] sm:$0xf]
  %v975 = vld [vmem:[%s10 + $0x78] sm:$0xf]
  %v976 = vld [vmem:[%s10 + $0x7c] sm:$0xf]
  %v977 = vld [vmem:[%s10 + $0x80] sm:$0xf]
  %v978 = vld [vmem:[%s10 + $0x84] sm:$0xf]
  %v979 = vld [vmem:[%s10 + $0x88] sm:$0xf]
  %v980 = vld [vmem:[%s10 + $0x8c] sm:$0xf]
  %v981 = vld [vmem:[%s10 + $0x90] sm:$0xf]
  %v982 = vld [vmem:[%s10 + $0x94] sm:$0xf]
  %v983 = vld [vmem:[%s10 + $0x98] sm:$0xf]
  %v984 = vld [vmem:[%s10 + $0x9c] sm:$0xf]
  %v985 = vld [vmem:[%s10 + $0xa0] sm:$0xf]
  %v986 = vld [vmem:[%s10 + $0xa4] sm:$0xf]
  %v987 = vld [vmem:[%s10 + $0xa8] sm:$0xf]
  %v988 = vld [vmem:[%s10 + $0xac] sm:$0xf]
  %v989 = vld [vmem:[%s10 + $0xb0] sm:$0xf]
  %v990 = vld [vmem:[%s10 + $0xb4] sm:$0xf]
  %v991 = vld [vmem:[%s10 + $0xb8] sm:$0xf]
  %v992 = vld [vmem:[%s10 + $0xbc] sm:$0xf]
  %v1041 = vunpack.c.l.b16 %v945
  %v1042 = vunpack.c.l.b16 %v946
  %v1043 = vunpack.c.l.b16 %v947
  %v1044 = vunpack.c.l.b16 %v948
  %v1045 = vunpack.c.l.b16 %v949
  %v1046 = vunpack.c.l.b16 %v950
  %v1047 = vunpack.c.l.b16 %v951
  %v1048 = vunpack.c.l.b16 %v952
  %v1049 = vunpack.c.l.b16 %v953
  %v1050 = vunpack.c.l.b16 %v954
  %v1051 = vunpack.c.l.b16 %v955
  %v1052 = vunpack.c.l.b16 %v956
  %v1053 = vunpack.c.l.b16 %v957
  %v1054 = vunpack.c.l.b16 %v958
  %v1055 = vunpack.c.l.b16 %v959
  %v1056 = vunpack.c.l.b16 %v960
  %v1057 = vunpack.c.l.b16 %v961
  %v1058 = vunpack.c.l.b16 %v962
  %v1059 = vunpack.c.l.b16 %v963
  %v1060 = vunpack.c.l.b16 %v964
  %v1061 = vunpack.c.l.b16 %v965
  %v1062 = vunpack.c.l.b16 %v966
  %v1063 = vunpack.c.l.b16 %v967
  %v1064 = vunpack.c.l.b16 %v968
  %v1065 = vunpack.c.l.b16 %v969
  %v1066 = vunpack.c.l.b16 %v970
  %v1067 = vunpack.c.l.b16 %v971
  %v1068 = vunpack.c.l.b16 %v972
  %v1069 = vunpack.c.l.b16 %v973
  %v1070 = vunpack.c.l.b16 %v974
  %v1071 = vunpack.c.l.b16 %v975
  %v1072 = vunpack.c.l.b16 %v976
  %v1073 = vunpack.c.l.b16 %v977
  %v1074 = vunpack.c.l.b16 %v978
  %v1075 = vunpack.c.l.b16 %v979
  %v1076 = vunpack.c.l.b16 %v980
  %v1077 = vunpack.c.l.b16 %v981
  %v1078 = vunpack.c.l.b16 %v982
  %v1079 = vunpack.c.l.b16 %v983
  %v1080 = vunpack.c.l.b16 %v984
  %v1081 = vunpack.c.l.b16 %v985
  %v1082 = vunpack.c.l.b16 %v986
  %v1083 = vunpack.c.l.b16 %v987
  %v1084 = vunpack.c.l.b16 %v988
  %v1085 = vunpack.c.l.b16 %v989
  %v1086 = vunpack.c.l.b16 %v990
  %v1087 = vunpack.c.l.b16 %v991
  %v1088 = vunpack.c.l.b16 %v992
  %v1089 = vpack.c.b16 %v1042, %v1041
  %v1090 = vpack.c.b16 %v1044, %v1043
  %v1091 = vpack.c.b16 %v1046, %v1045
  %v1092 = vpack.c.b16 %v1048, %v1047
  %v1093 = vpack.c.b16 %v1050, %v1049
  %v1094 = vpack.c.b16 %v1052, %v1051
  %v1095 = vpack.c.b16 %v1054, %v1053
  %v1096 = vpack.c.b16 %v1056, %v1055
  %v1097 = vpack.c.b16 %v1058, %v1057
  %v1098 = vpack.c.b16 %v1060, %v1059
  %v1099 = vpack.c.b16 %v1062, %v1061
  %v1100 = vpack.c.b16 %v1064, %v1063
  %v1101 = vpack.c.b16 %v1066, %v1065
  %v1102 = vpack.c.b16 %v1068, %v1067
  %v1103 = vpack.c.b16 %v1070, %v1069
  %v1104 = vpack.c.b16 %v1072, %v1071
  %v1105 = vpack.c.b16 %v1074, %v1073
  %v1106 = vpack.c.b16 %v1076, %v1075
  %v1107 = vpack.c.b16 %v1078, %v1077
  %v1108 = vpack.c.b16 %v1080, %v1079
  %v1109 = vpack.c.b16 %v1082, %v1081
  %v1110 = vpack.c.b16 %v1084, %v1083
  %v1111 = vpack.c.b16 %v1086, %v1085
  %v1112 = vpack.c.b16 %v1088, %v1087
  %1137 = vmatpush.bf16.msra.mxu0 %v1096
  %1138 = vmatpush.bf16.msra.mxu0 %v1095
  %1139 = vmatpush.bf16.msra.mxu0 %v1094
  %1140 = vmatpush.bf16.msra.mxu0 %v1093
  %1141 = vmatpush.bf16.msra.mxu0 %v1092
  %1142 = vmatpush.bf16.msra.mxu0 %v1091
  %1143 = vmatpush.bf16.msra.mxu0 %v1090
  %1144 = vmatpush.bf16.msra.mxu0 %v1089
  %1145 = vmatmul.bf16.gmra.mxu0 %v939
  %v1146 = vpop.f32.mrf.mxu0
  %v1147 = vadd.f32 0.0, %v1146
  %v1148 = vpop.f32.mrf.mxu0
  %v1149 = vadd.f32 0.0, %v1148
  %1150 = vmatmul.bf16.gmra.mxu0 %v942
  %v1151 = vpop.f32.mrf.mxu0
  %v1152 = vadd.f32 0.0, %v1151
  %v1153 = vpop.f32.mrf.mxu0
  %v1154 = vadd.f32 0.0, %v1153
  %1155 = vdwg.mxu0
  %1156 = vmatpush.bf16.msra.mxu0 %v1104
  %1157 = vmatpush.bf16.msra.mxu0 %v1103
  %1158 = vmatpush.bf16.msra.mxu0 %v1102
  %1159 = vmatpush.bf16.msra.mxu0 %v1101
  %1160 = vmatpush.bf16.msra.mxu0 %v1100
  %1161 = vmatpush.bf16.msra.mxu0 %v1099
  %1162 = vmatpush.bf16.msra.mxu0 %v1098
  %1163 = vmatpush.bf16.msra.mxu0 %v1097
  %1164 = vmatmul.bf16.gmra.mxu0 %v940
  %v1165 = vpop.f32.mrf.mxu0
  %v1166 = vadd.f32 %v1147, %v1165
  %v1167 = vpop.f32.mrf.mxu0
  %v1168 = vadd.f32 %v1149, %v1167
  %1169 = vmatmul.bf16.gmra.mxu0 %v943
  %v1170 = vpop.f32.mrf.mxu0
  %v1171 = vadd.f32 %v1152, %v1170
  %v1172 = vpop.f32.mrf.mxu0
  %v1173 = vadd.f32 %v1154, %v1172
  %1174 = vdwg.mxu0
  %1175 = vmatpush.bf16.msra.mxu0 %v1112
  %1176 = vmatpush.bf16.msra.mxu0 %v1111
  %1177 = vmatpush.bf16.msra.mxu0 %v1110
  %1178 = vmatpush.bf16.msra.mxu0 %v1109
  %1179 = vmatpush.bf16.msra.mxu0 %v1108
  %1180 = vmatpush.bf16.msra.mxu0 %v1107
  %1181 = vmatpush.bf16.msra.mxu0 %v1106
  %1182 = vmatpush.bf16.msra.mxu0 %v1105
  %1183 = vmatmul.bf16.gmra.mxu0 %v941
  %v1184 = vpop.f32.mrf.mxu0
  %v1185 = vadd.f32 %v1166, %v1184
  %v1186 = vpop.f32.mrf.mxu0
  %v1187 = vadd.f32 %v1168, %v1186
  %1188 = vmatmul.bf16.gmra.mxu0 %v944
  %v1189 = vpop.f32.mrf.mxu0
  %v1190 = vadd.f32 %v1171, %v1189
  %v1191 = vpop.f32.mrf.mxu0
  %v1192 = vadd.f32 %v1173, %v1191
  %1193 = vdwg.mxu0
  %v1194 = vld [vmem:[%s11] sm:$0x1]
  %v1196 = vperm.slane %v1194, 0
  %v1198 = vmul.f32 %v1185, %v1196
  %v1199 = vmul.f32 %v1187, %v1196
  %v1200 = vmul.f32 %v1190, %v1196
  %v1201 = vmul.f32 %v1192, %v1196
  %v1202 = vld [vmem:[%s12] sm:$0x1]
  %v1204 = vperm.slane %v1202, 0
  %v1206 = vadd.f32 %v1198, %v1204
  %v1207 = vadd.f32 %v1199, %v1204
  %v1208 = vadd.f32 %v1200, %v1204
  %v1209 = vadd.f32 %v1201, %v1204
  %v1210 = vmul.f32 %v1206, %v1206
  %v1211 = vmul.f32 %v1207, %v1207
  %v1212 = vmul.f32 %v1208, %v1208
  %v1213 = vmul.f32 %v1209, %v1209
  %v1214 = vmul.f32 %v1206, %v1210
  %v1215 = vmul.f32 %v1207, %v1211
  %v1216 = vmul.f32 %v1208, %v1212
  %v1217 = vmul.f32 %v1209, %v1213
  %v1218 = vmul.f32 %v1214, 0.044715
  %v1219 = vmul.f32 %v1215, 0.044715
  %v1220 = vmul.f32 %v1216, 0.044715
  %v1221 = vmul.f32 %v1217, 0.044715
  %v1222 = vadd.f32 %v1206, %v1218
  %v1223 = vadd.f32 %v1207, %v1219
  %v1224 = vadd.f32 %v1208, %v1220
  %v1225 = vadd.f32 %v1209, %v1221
  %v1226 = vmul.f32 %v1222, 0.7978846
  %v1227 = vmul.f32 %v1223, 0.7978846
  %v1228 = vmul.f32 %v1224, 0.7978846
  %v1229 = vmul.f32 %v1225, 0.7978846
  %v1230 = vtanh.pop %v1226
  %v1231 = vtanh.pop %v1227
  %v1232 = vtanh.pop %v1228
  %v1233 = vtanh.pop %v1229
  %v1234 = vadd.f32 %v1230, 1.0
  %v1235 = vadd.f32 %v1231, 1.0
  %v1236 = vadd.f32 %v1232, 1.0
  %v1237 = vadd.f32 %v1233, 1.0
  %v1238 = vmul.f32 %v1234, 0.5
  %v1239 = vmul.f32 %v1235, 0.5
  %v1240 = vmul.f32 %v1236, 0.5
  %v1241 = vmul.f32 %v1237, 0.5
  %v1242 = vmul.f32 %v1206, %v1238
  %v1243 = vmul.f32 %v1207, %v1239
  %v1244 = vmul.f32 %v1208, %v1240
  %v1245 = vmul.f32 %v1209, %v1241
  %v1250 = vrot.slane %v1242, 7
  %v1251 = vrot.slane %v1243, 7
  %v1252 = vsel %vm215, %v1250, %v1251
  %v1253 = vrot.slane %v1244, 7
  %v1254 = vsel %vm215, %v1251, %v1253
  %v1255 = vrot.slane %v1245, 7
  %v1256 = vsel %vm215, %v1253, %v1255
  %v1261 = vsel %vm215, 0.0, %v1250
  %v1262 = vmul.f32 %v1261, %v87
  %v1263 = vmul.f32 %v1252, %v88
  %v1264 = vmul.f32 %v1254, %v89
  %v1265 = vmul.f32 %v1256, %v90
  %v1266 = vrot.slane %v1242, 1
  %v1267 = vrot.slane %v1243, 1
  %v1268 = vsel %vm232, %v1266, %v1267
  %v1269 = vrot.slane %v1244, 1
  %v1270 = vsel %vm232, %v1267, %v1269
  %v1271 = vrot.slane %v1245, 1
  %v1272 = vsel %vm232, %v1269, %v1271
  %v1277 = vsel %vm232, %v1271, 0.0
  %v1278 = vmul.f32 %v1268, %v95
  %v1279 = vmul.f32 %v1270, %v96
  %v1280 = vmul.f32 %v1272, %v97
  %v1281 = vmul.f32 %v1277, %v98
  %v1282 = vpack.c.bf16 %v1263, %v1262
  %v1283 = vpack.c.bf16 %v1243, %v1242
  %v1284 = vpack.c.bf16 %v1279, %v1278
  %v1285 = vpack.c.bf16 %v1265, %v1264
  %v1286 = vpack.c.bf16 %v1245, %v1244
  %v1287 = vpack.c.bf16 %v1281, %v1280
  %v1288 = vld [vmem:[%s13] sm:$0xf]
  %v1289 = vld [vmem:[%s13 + $0x4] sm:$0xf]
  %v1290 = vld [vmem:[%s13 + $0x8] sm:$0xf]
  %v1291 = vld [vmem:[%s13 + $0xc] sm:$0xf]
  %v1292 = vld [vmem:[%s13 + $0x10] sm:$0xf]
  %v1293 = vld [vmem:[%s13 + $0x14] sm:$0xf]
  %v1294 = vld [vmem:[%s13 + $0x18] sm:$0xf]
  %v1295 = vld [vmem:[%s13 + $0x1c] sm:$0xf]
  %v1296 = vld [vmem:[%s13 + $0x20] sm:$0xf]
  %v1297 = vld [vmem:[%s13 + $0x24] sm:$0xf]
  %v1298 = vld [vmem:[%s13 + $0x28] sm:$0xf]
  %v1299 = vld [vmem:[%s13 + $0x2c] sm:$0xf]
  %v1300 = vld [vmem:[%s13 + $0x30] sm:$0xf]
  %v1301 = vld [vmem:[%s13 + $0x34] sm:$0xf]
  %v1302 = vld [vmem:[%s13 + $0x38] sm:$0xf]
  %v1303 = vld [vmem:[%s13 + $0x3c] sm:$0xf]
  %v1304 = vld [vmem:[%s13 + $0x40] sm:$0xf]
  %v1305 = vld [vmem:[%s13 + $0x44] sm:$0xf]
  %v1306 = vld [vmem:[%s13 + $0x48] sm:$0xf]
  %v1307 = vld [vmem:[%s13 + $0x4c] sm:$0xf]
  %v1308 = vld [vmem:[%s13 + $0x50] sm:$0xf]
  %v1309 = vld [vmem:[%s13 + $0x54] sm:$0xf]
  %v1310 = vld [vmem:[%s13 + $0x58] sm:$0xf]
  %v1311 = vld [vmem:[%s13 + $0x5c] sm:$0xf]
  %v1312 = vld [vmem:[%s13 + $0x60] sm:$0xf]
  %v1313 = vld [vmem:[%s13 + $0x64] sm:$0xf]
  %v1314 = vld [vmem:[%s13 + $0x68] sm:$0xf]
  %v1315 = vld [vmem:[%s13 + $0x6c] sm:$0xf]
  %v1316 = vld [vmem:[%s13 + $0x70] sm:$0xf]
  %v1317 = vld [vmem:[%s13 + $0x74] sm:$0xf]
  %v1318 = vld [vmem:[%s13 + $0x78] sm:$0xf]
  %v1319 = vld [vmem:[%s13 + $0x7c] sm:$0xf]
  %v1320 = vld [vmem:[%s13 + $0x80] sm:$0xf]
  %v1321 = vld [vmem:[%s13 + $0x84] sm:$0xf]
  %v1322 = vld [vmem:[%s13 + $0x88] sm:$0xf]
  %v1323 = vld [vmem:[%s13 + $0x8c] sm:$0xf]
  %v1324 = vld [vmem:[%s13 + $0x90] sm:$0xf]
  %v1325 = vld [vmem:[%s13 + $0x94] sm:$0xf]
  %v1326 = vld [vmem:[%s13 + $0x98] sm:$0xf]
  %v1327 = vld [vmem:[%s13 + $0x9c] sm:$0xf]
  %v1328 = vld [vmem:[%s13 + $0xa0] sm:$0xf]
  %v1329 = vld [vmem:[%s13 + $0xa4] sm:$0xf]
  %v1330 = vld [vmem:[%s13 + $0xa8] sm:$0xf]
  %v1331 = vld [vmem:[%s13 + $0xac] sm:$0xf]
  %v1332 = vld [vmem:[%s13 + $0xb0] sm:$0xf]
  %v1333 = vld [vmem:[%s13 + $0xb4] sm:$0xf]
  %v1334 = vld [vmem:[%s13 + $0xb8] sm:$0xf]
  %v1335 = vld [vmem:[%s13 + $0xbc] sm:$0xf]
  %v1384 = vunpack.c.l.b16 %v1288
  %v1385 = vunpack.c.l.b16 %v1289
  %v1386 = vunpack.c.l.b16 %v1290
  %v1387 = vunpack.c.l.b16 %v1291
  %v1388 = vunpack.c.l.b16 %v1292
  %v1389 = vunpack.c.l.b16 %v1293
  %v1390 = vunpack.c.l.b16 %v1294
  %v1391 = vunpack.c.l.b16 %v1295
  %v1392 = vunpack.c.l.b16 %v1296
  %v1393 = vunpack.c.l.b16 %v1297
  %v1394 = vunpack.c.l.b16 %v1298
  %v1395 = vunpack.c.l.b16 %v1299
  %v1396 = vunpack.c.l.b16 %v1300
  %v1397 = vunpack.c.l.b16 %v1301
  %v1398 = vunpack.c.l.b16 %v1302
  %v1399 = vunpack.c.l.b16 %v1303
  %v1400 = vunpack.c.l.b16 %v1304
  %v1401 = vunpack.c.l.b16 %v1305
  %v1402 = vunpack.c.l.b16 %v1306
  %v1403 = vunpack.c.l.b16 %v1307
  %v1404 = vunpack.c.l.b16 %v1308
  %v1405 = vunpack.c.l.b16 %v1309
  %v1406 = vunpack.c.l.b16 %v1310
  %v1407 = vunpack.c.l.b16 %v1311
  %v1408 = vunpack.c.l.b16 %v1312
  %v1409 = vunpack.c.l.b16 %v1313
  %v1410 = vunpack.c.l.b16 %v1314
  %v1411 = vunpack.c.l.b16 %v1315
  %v1412 = vunpack.c.l.b16 %v1316
  %v1413 = vunpack.c.l.b16 %v1317
  %v1414 = vunpack.c.l.b16 %v1318
  %v1415 = vunpack.c.l.b16 %v1319
  %v1416 = vunpack.c.l.b16 %v1320
  %v1417 = vunpack.c.l.b16 %v1321
  %v1418 = vunpack.c.l.b16 %v1322
  %v1419 = vunpack.c.l.b16 %v1323
  %v1420 = vunpack.c.l.b16 %v1324
  %v1421 = vunpack.c.l.b16 %v1325
  %v1422 = vunpack.c.l.b16 %v1326
  %v1423 = vunpack.c.l.b16 %v1327
  %v1424 = vunpack.c.l.b16 %v1328
  %v1425 = vunpack.c.l.b16 %v1329
  %v1426 = vunpack.c.l.b16 %v1330
  %v1427 = vunpack.c.l.b16 %v1331
  %v1428 = vunpack.c.l.b16 %v1332
  %v1429 = vunpack.c.l.b16 %v1333
  %v1430 = vunpack.c.l.b16 %v1334
  %v1431 = vunpack.c.l.b16 %v1335
  %v1432 = vpack.c.b16 %v1385, %v1384
  %v1433 = vpack.c.b16 %v1387, %v1386
  %v1434 = vpack.c.b16 %v1389, %v1388
  %v1435 = vpack.c.b16 %v1391, %v1390
  %v1436 = vpack.c.b16 %v1393, %v1392
  %v1437 = vpack.c.b16 %v1395, %v1394
  %v1438 = vpack.c.b16 %v1397, %v1396
  %v1439 = vpack.c.b16 %v1399, %v1398
  %v1440 = vpack.c.b16 %v1401, %v1400
  %v1441 = vpack.c.b16 %v1403, %v1402
  %v1442 = vpack.c.b16 %v1405, %v1404
  %v1443 = vpack.c.b16 %v1407, %v1406
  %v1444 = vpack.c.b16 %v1409, %v1408
  %v1445 = vpack.c.b16 %v1411, %v1410
  %v1446 = vpack.c.b16 %v1413, %v1412
  %v1447 = vpack.c.b16 %v1415, %v1414
  %v1448 = vpack.c.b16 %v1417, %v1416
  %v1449 = vpack.c.b16 %v1419, %v1418
  %v1450 = vpack.c.b16 %v1421, %v1420
  %v1451 = vpack.c.b16 %v1423, %v1422
  %v1452 = vpack.c.b16 %v1425, %v1424
  %v1453 = vpack.c.b16 %v1427, %v1426
  %v1454 = vpack.c.b16 %v1429, %v1428
  %v1455 = vpack.c.b16 %v1431, %v1430
  %1480 = vmatpush.bf16.msra.mxu0 %v1439
  %1481 = vmatpush.bf16.msra.mxu0 %v1438
  %1482 = vmatpush.bf16.msra.mxu0 %v1437
  %1483 = vmatpush.bf16.msra.mxu0 %v1436
  %1484 = vmatpush.bf16.msra.mxu0 %v1435
  %1485 = vmatpush.bf16.msra.mxu0 %v1434
  %1486 = vmatpush.bf16.msra.mxu0 %v1433
  %1487 = vmatpush.bf16.msra.mxu0 %v1432
  %1488 = vmatmul.bf16.gmra.mxu0 %v1282
  %v1489 = vpop.f32.mrf.mxu0
  %v1490 = vadd.f32 0.0, %v1489
  %v1491 = vpop.f32.mrf.mxu0
  %v1492 = vadd.f32 0.0, %v1491
  %1493 = vmatmul.bf16.gmra.mxu0 %v1285
  %v1494 = vpop.f32.mrf.mxu0
  %v1495 = vadd.f32 0.0, %v1494
  %v1496 = vpop.f32.mrf.mxu0
  %v1497 = vadd.f32 0.0, %v1496
  %1498 = vdwg.mxu0
  %1499 = vmatpush.bf16.msra.mxu0 %v1447
  %1500 = vmatpush.bf16.msra.mxu0 %v1446
  %1501 = vmatpush.bf16.msra.mxu0 %v1445
  %1502 = vmatpush.bf16.msra.mxu0 %v1444
  %1503 = vmatpush.bf16.msra.mxu0 %v1443
  %1504 = vmatpush.bf16.msra.mxu0 %v1442
  %1505 = vmatpush.bf16.msra.mxu0 %v1441
  %1506 = vmatpush.bf16.msra.mxu0 %v1440
  %1507 = vmatmul.bf16.gmra.mxu0 %v1283
  %v1508 = vpop.f32.mrf.mxu0
  %v1509 = vadd.f32 %v1490, %v1508
  %v1510 = vpop.f32.mrf.mxu0
  %v1511 = vadd.f32 %v1492, %v1510
  %1512 = vmatmul.bf16.gmra.mxu0 %v1286
  %v1513 = vpop.f32.mrf.mxu0
  %v1514 = vadd.f32 %v1495, %v1513
  %v1515 = vpop.f32.mrf.mxu0
  %v1516 = vadd.f32 %v1497, %v1515
  %1517 = vdwg.mxu0
  %1518 = vmatpush.bf16.msra.mxu0 %v1455
  %1519 = vmatpush.bf16.msra.mxu0 %v1454
  %1520 = vmatpush.bf16.msra.mxu0 %v1453
  %1521 = vmatpush.bf16.msra.mxu0 %v1452
  %1522 = vmatpush.bf16.msra.mxu0 %v1451
  %1523 = vmatpush.bf16.msra.mxu0 %v1450
  %1524 = vmatpush.bf16.msra.mxu0 %v1449
  %1525 = vmatpush.bf16.msra.mxu0 %v1448
  %1526 = vmatmul.bf16.gmra.mxu0 %v1284
  %v1527 = vpop.f32.mrf.mxu0
  %v1528 = vadd.f32 %v1509, %v1527
  %v1529 = vpop.f32.mrf.mxu0
  %v1530 = vadd.f32 %v1511, %v1529
  %1531 = vmatmul.bf16.gmra.mxu0 %v1287
  %v1532 = vpop.f32.mrf.mxu0
  %v1533 = vadd.f32 %v1514, %v1532
  %v1534 = vpop.f32.mrf.mxu0
  %v1535 = vadd.f32 %v1516, %v1534
  %1536 = vdwg.mxu0
  %v1537 = vld [vmem:[%s14] sm:$0x1]
  %v1539 = vperm.slane %v1537, 0
  %v1541 = vmul.f32 %v1528, %v1539
  %v1542 = vmul.f32 %v1530, %v1539
  %v1543 = vmul.f32 %v1533, %v1539
  %v1544 = vmul.f32 %v1535, %v1539
  %v1545 = vld [vmem:[%s15] sm:$0x1]
  %v1547 = vperm.slane %v1545, 0
  %v1549 = vadd.f32 %v1541, %v1547
  %v1550 = vadd.f32 %v1542, %v1547
  %v1551 = vadd.f32 %v1543, %v1547
  %v1552 = vadd.f32 %v1544, %v1547
  %1553 = vst [vmem:[%s16] sm:$0xff] %v1549
  %1554 = vst [vmem:[%s16 + $0x8] sm:$0xff] %v1550
  %1555 = vst [vmem:[%s16 + $0x10] sm:$0xff] %v1551
  %1556 = vst [vmem:[%s16 + $0x18] sm:$0xff] %v1552
  // Predicated region
  $region66: #{upsample_forward.1} parent=0 // pred_check
    _
  $region67: #{upsample_forward.1} parent=0 // pred_check_branch
    %1558 = sbr.rel (0) target = $region69
  $region68: #{upsample_forward.1} parent=0 // pred_region
    _
  $region69: #{upsample_forward.1} parent=0 // pred_fallthru
    _
  // Predicated region
  $region70: #{upsample_forward.1} parent=0 // pred_check
    _
  $region71: #{upsample_forward.1} parent=0 // pred_check_branch
    %1560 = sbr.rel (0) target = $region73
  $region72: #{upsample_forward.1} parent=0 // pred_region
    _
  $region73: #{upsample_forward.1} parent=0 // pred_fallthru
    _

</llo_original>
